<compile_context>
chip_gen: v7x
topology: tpu7x:2x2x1
jax: 0.10.0
libtpu: 0.0.40
codegen_flags: <defaults>
</compile_context>

<pallas_src>
import functools

import jax
import jax.numpy as jnp
from jax import lax
from jax.experimental import pallas as pl
from jax.experimental.pallas import tpu as pltpu


def _round_up(x: int, m: int) -> int:
    return (x + m - 1) // m * m


def _simcse_tile_kernel(z1_ref, z2_ref, out_ref,
                        z1s_ref, m_ref, l_ref, s_ref, p_ref, d_ref,
                        *, tile: int, batch: int, inv_temp: float,
                        compute_dtype):
    qi = pl.program_id(0)
    ki = pl.program_id(1)
    nk = pl.num_programs(1)

    @pl.when(ki == 0)
    def _init():
        # Normalize the resident z1 tile once per q tile; fold 1/temperature
        # into its per-row scale (rsqrt -> EUP) so no extra divide is needed.
        z1 = z1_ref[...].astype(jnp.float32)
        ssq = jnp.sum(z1 * z1, axis=1, keepdims=True)
        scale = lax.rsqrt(jnp.maximum(ssq, 1e-24)) * inv_temp  # eps matches F.normalize
        z1s_ref[...] = (z1 * scale).astype(compute_dtype)
        m_ref[...] = jnp.full_like(m_ref, -jnp.inf)
        l_ref[...] = jnp.zeros_like(l_ref)
        s_ref[...] = jnp.zeros_like(s_ref)
        p_ref[...] = jnp.zeros_like(p_ref)
        d_ref[...] = jnp.zeros_like(d_ref)

    # Normalize the streamed z2 tile.
    z2 = z2_ref[...].astype(jnp.float32)
    ssq2 = jnp.sum(z2 * z2, axis=1, keepdims=True)
    z2s = (z2 * lax.rsqrt(jnp.maximum(ssq2, 1e-24))).astype(compute_dtype)

    z1s = z1s_ref[...]

    # Similarity tile on the MXU; contract last dims of both (no XLU .T),
    # temperature already folded into z1s.
    sim = lax.dot_general(z1s, z2s, (((1,), (1,)), ((), ())),
                          preferred_element_type=jnp.float32)

    col_ids = ki * tile + lax.broadcasted_iota(jnp.int32, sim.shape, 1)
    valid_col = col_ids < batch
    sim_m = jnp.where(valid_col, sim, -jnp.inf)

    tile_max = jnp.max(sim_m, axis=1, keepdims=True)
    m_old = m_ref[...]
    m_new = jnp.maximum(m_old, tile_max)

    # Online softmax denominator (single fused pass over the sim tile).
    alpha = jnp.exp(m_old - m_new)          # == 0 on the first tile (m_old = -inf)
    p_exp = jnp.exp(sim_m - m_new)          # masked cols -> exp(-inf) = 0
    l_ref[...] = l_ref[...] * alpha + jnp.sum(p_exp, axis=1, keepdims=True)

    # Streaming argmax with torch tie-break (first maximal index).
    tile_arg = jnp.min(jnp.where(sim_m >= tile_max, col_ids, jnp.int32(2 ** 30)),
                       axis=1, keepdims=True)
    p_ref[...] = jnp.where(tile_max > m_old, tile_arg, p_ref[...])
    m_ref[...] = m_new

    # Row sum over valid columns (for mean negative similarity).
    s_ref[...] += jnp.sum(jnp.where(valid_col, sim, 0.0), axis=1, keepdims=True)

    # Diagonal sim[i, i] as a row-wise dot; tq == tk so the matching z2 rows
    # are exactly the tile where ki == qi.  No B x B identity mask / iotas.
    @pl.when(ki == qi)
    def _diag():
        d_ref[...] = jnp.sum(z1s.astype(jnp.float32) * z2s.astype(jnp.float32),
                             axis=1, keepdims=True)

    @pl.when(ki == nk - 1)
    def _finalize():
        row_ids = qi * tile + lax.broadcasted_iota(jnp.int32, (tile, 1), 0)
        valid_row = row_ids < batch
        lse = m_ref[...] + jnp.log(l_ref[...])
        diag = d_ref[...]
        loss_r = jnp.where(valid_row, lse - diag, 0.0)                 # CE per row
        corr_r = jnp.where(valid_row & (p_ref[...] == row_ids), 1.0, 0.0)
        diag_r = jnp.where(valid_row, diag, 0.0)
        sum_r = jnp.where(valid_row, s_ref[...], 0.0)
        out_ref[...] = jnp.concatenate([loss_r, corr_r, diag_r, sum_r], axis=1)


def simcse_embedding_loss(embeddings: jax.Array,
                          temperature: float = 0.05,
                          reduction: str = "mean",
                          tile: int = 128):
    """Pallas port of SimCSEEmbeddingLoss.forward.

    Args:
      embeddings: [2*batch, hidden] array (first/second half = two dropout views).
    Returns:
      dict with 'loss', 'accuracy', 'positive_similarity', 'negative_similarity'.
    """
    two_b, hidden = embeddings.shape
    batch = two_b // 2

    hp = _round_up(hidden, 128)          # lane / MXU alignment
    bp = _round_up(batch, tile)
    nt = bp // tile

    z1 = jnp.pad(embeddings[:batch], ((0, bp - batch), (0, hp - hidden)))
    z2 = jnp.pad(embeddings[batch:2 * batch], ((0, bp - batch), (0, hp - hidden)))

    # bf16 inputs -> bf16 MXU operands (f32 accumulation); f32 stays f32.
    compute_dtype = jnp.bfloat16 if embeddings.dtype == jnp.bfloat16 else jnp.float32

    in_bytes = jnp.dtype(embeddings.dtype).itemsize
    est = (4 * tile * hp * in_bytes                           # 2 inputs x 2 buffers
           + tile * hp * jnp.dtype(compute_dtype).itemsize    # z1s scratch
           + 8 * tile * 128 * 4)                              # small scratch / output slack
    vmem_limit = int(min(max(2 * est, 16 * 2 ** 20), 48 * 2 ** 20))

    kernel = functools.partial(_simcse_tile_kernel,
                               tile=tile, batch=batch,
                               inv_temp=float(1.0 / temperature),
                               compute_dtype=compute_dtype)

    partials = pl.pallas_call(
        kernel,
        out_shape=jax.ShapeDtypeStruct((bp, 4), jnp.float32),
        grid_spec=pltpu.PrefetchScalarGridSpec(
            num_scalar_prefetch=0,
            grid=(nt, nt),
            in_specs=[pl.BlockSpec((tile, hp), lambda qi, ki: (qi, 0)),   # z1 q-tile
                      pl.BlockSpec((tile, hp), lambda qi, ki: (ki, 0))],  # z2 k-tile
            out_specs=pl.BlockSpec((tile, 4), lambda qi, ki: (qi, 0)),
            scratch_shapes=[pltpu.VMEM((tile, hp), compute_dtype),  # normalized z1
                            pltpu.VMEM((tile, 1), jnp.float32),     # running max
                            pltpu.VMEM((tile, 1), jnp.float32),     # running exp-sum
                            pltpu.VMEM((tile, 1), jnp.float32),     # running row-sum
                            pltpu.VMEM((tile, 1), jnp.int32),       # running argmax
                            pltpu.VMEM((tile, 1), jnp.float32)]),   # diagonal
        compiler_params=pltpu.CompilerParams(
            dimension_semantics=("parallel", "arbitrary"),
            vmem_limit_bytes=vmem_limit),
    )(z1, z2)

    sums = jnp.sum(partials, axis=0)          # tiny O(B) epilogue reduction
    loss = sums[0] / batch
    if reduction == "sum":
        loss = loss * batch
    acc = sums[1] / batch
    pos = sums[2] / batch
    denom = batch * (batch - 1)
    # Guard batch == 1 (the PyTorch reference would produce 0/0 -> nan here).
    neg = (sums[3] - sums[2]) / denom if denom > 0 else jnp.float32(0.0)
    return {"loss": loss, "accuracy": acc,
            "positive_similarity": pos, "negative_similarity": neg}


def _reference(embeddings, temperature=0.05):
    """Pure-JAX reference mirroring the PyTorch forward, for verification."""
    B = embeddings.shape[0] // 2
    z1, z2 = embeddings[:B], embeddings[B:]
    z1 = z1 / jnp.maximum(jnp.linalg.norm(z1, axis=1, keepdims=True), 1e-12)
    z2 = z2 / jnp.maximum(jnp.linalg.norm(z2, axis=1, keepdims=True), 1e-12)
    sim = (z1 @ z2.T) / temperature
    labels = jnp.arange(B)
    lse = jax.scipy.special.logsumexp(sim, axis=1)
    diag = jnp.diagonal(sim)
    loss = jnp.mean(lse - diag)
    acc = jnp.mean((jnp.argmax(sim, axis=1) == labels).astype(jnp.float32))
    pos = jnp.mean(diag)
    neg = (jnp.sum(sim) - jnp.sum(diag)) / (B * (B - 1))
    return loss, acc, pos, neg


if __name__ == "__main__":
    key = jax.random.PRNGKey(0)

    # Primary small demo shape (batch=8, hidden=32), plus a ragged shape that
    # exercises multi-tile streaming and row/column padding masks.
    for (bs, hid) in [(8, 32), (200, 96)]:
        k = jax.random.fold_in(key, bs)
        embeddings = jax.random.normal(k, (2 * bs, hid), dtype=jnp.float32)

        metrics = simcse_embedding_loss(embeddings, temperature=0.05,
                                        reduction="mean")
        jax.block_until_ready(metrics["loss"])

        ref_loss, ref_acc, ref_pos, ref_neg = _reference(embeddings, 0.05)
        assert jnp.allclose(metrics["loss"], ref_loss, atol=2e-3), (
            metrics["loss"], ref_loss)
        assert jnp.allclose(metrics["accuracy"], ref_acc, atol=1e-6), (
            metrics["accuracy"], ref_acc)
        assert jnp.allclose(metrics["positive_similarity"], ref_pos, atol=2e-3), (
            metrics["positive_similarity"], ref_pos)
        assert jnp.allclose(metrics["negative_similarity"], ref_neg, atol=2e-3), (
            metrics["negative_similarity"], ref_neg)

    print("KERNEL_OK")
</pallas_src>

<mosaic_0001>
module attributes {stable_mosaic.version = 11 : i64} {
  func.func @_simcse_tile_kernel(%arg0: i32, %arg1: i32, %arg2: memref<128x128xf32, #tpu.memory_space<vmem>>, %arg3: memref<128x128xf32, #tpu.memory_space<vmem>>, %arg4: memref<128x4xf32, #tpu.memory_space<vmem>>, %arg5: memref<128x128xf32, #tpu.memory_space<vmem>>, %arg6: memref<128x1xf32, #tpu.memory_space<vmem>>, %arg7: memref<128x1xf32, #tpu.memory_space<vmem>>, %arg8: memref<128x1xf32, #tpu.memory_space<vmem>>, %arg9: memref<128x1xi32, #tpu.memory_space<vmem>>, %arg10: memref<128x1xf32, #tpu.memory_space<vmem>>) attributes {dimension_semantics = [#tpu.dimension_semantics<parallel>, #tpu.dimension_semantics<arbitrary>], iteration_bounds = array<i64: 1, 1>, scalar_prefetch = 0 : i64, scratch_operands = 6 : i64, tpu.core_type = #tpu.core_type<tc>, window_params = [{transform_indices = @transform_0, window_bounds = array<i64: 128, 128>}, {transform_indices = @transform_1, window_bounds = array<i64: 128, 128>}, {transform_indices = @transform_2, window_bounds = array<i64: 128, 4>}]} {
    %c0_i32 = arith.constant 0 : i32
    %0 = arith.cmpi eq, %arg1, %c0_i32 : i32
    %1 = arith.extui %0 : i1 to i32
    %c0_i32_0 = arith.constant 0 : i32
    %2 = arith.cmpi ne, %1, %c0_i32_0 : i32
    scf.if %2 {
      %c0_31 = arith.constant 0 : index
      %c0_32 = arith.constant 0 : index
      %61 = vector.load %arg2[%c0_31, %c0_32] : memref<128x128xf32, #tpu.memory_space<vmem>>, vector<128x128xf32>
      %62 = arith.mulf %61, %61 : vector<128x128xf32>
      %cst_33 = arith.constant dense<0.000000e+00> : vector<128xf32>
      %63 = vector.multi_reduction <add>, %62, %cst_33 [1] : vector<128x128xf32> to vector<128xf32>
      %64 = vector.shape_cast %63 : vector<128xf32> to vector<128x1xf32>
      %cst_34 = arith.constant 1.000000e-24 : f32
      %65 = vector.broadcast %cst_34 : f32 to vector<128x1xf32>
      %66 = arith.maximumf %64, %65 : vector<128x1xf32>
      %67 = math.rsqrt %66 : vector<128x1xf32>
      %cst_35 = arith.constant 2.000000e+01 : f32
      %68 = vector.broadcast %cst_35 : f32 to vector<128x1xf32>
      %69 = arith.mulf %67, %68 : vector<128x1xf32>
      %70 = vector.broadcast %69 : vector<128x1xf32> to vector<128x128xf32>
      %71 = arith.mulf %61, %70 : vector<128x128xf32>
      %c0_36 = arith.constant 0 : index
      %c0_37 = arith.constant 0 : index
      %72 = vector.load %arg5[%c0_36, %c0_37] : memref<128x128xf32, #tpu.memory_space<vmem>>, vector<128x128xf32>
      tpu.vector_store %arg5[%c0_36, %c0_37], %71 {strides = array<i32>} : memref<128x128xf32, #tpu.memory_space<vmem>>, vector<128x128xf32>,
      %cst_38 = arith.constant 0xFF800000 : f32
      %73 = vector.broadcast %cst_38 : f32 to vector<128x1xf32>
      %c0_39 = arith.constant 0 : index
      %c0_40 = arith.constant 0 : index
      %74 = vector.load %arg6[%c0_39, %c0_40] : memref<128x1xf32, #tpu.memory_space<vmem>>, vector<128x1xf32>
      tpu.vector_store %arg6[%c0_39, %c0_40], %73 {strides = array<i32>} : memref<128x1xf32, #tpu.memory_space<vmem>>, vector<128x1xf32>,
      %cst_41 = arith.constant 0.000000e+00 : f32
      %75 = vector.broadcast %cst_41 : f32 to vector<128x1xf32>
      %c0_42 = arith.constant 0 : index
      %c0_43 = arith.constant 0 : index
      %76 = vector.load %arg7[%c0_42, %c0_43] : memref<128x1xf32, #tpu.memory_space<vmem>>, vector<128x1xf32>
      tpu.vector_store %arg7[%c0_42, %c0_43], %75 {strides = array<i32>} : memref<128x1xf32, #tpu.memory_space<vmem>>, vector<128x1xf32>,
      %cst_44 = arith.constant 0.000000e+00 : f32
      %77 = vector.broadcast %cst_44 : f32 to vector<128x1xf32>
      %c0_45 = arith.constant 0 : index
      %c0_46 = arith.constant 0 : index
      %78 = vector.load %arg8[%c0_45, %c0_46] : memref<128x1xf32, #tpu.memory_space<vmem>>, vector<128x1xf32>
      tpu.vector_store %arg8[%c0_45, %c0_46], %77 {strides = array<i32>} : memref<128x1xf32, #tpu.memory_space<vmem>>, vector<128x1xf32>,
      %c0_i32_47 = arith.constant 0 : i32
      %79 = vector.broadcast %c0_i32_47 : i32 to vector<128x1xi32>
      %c0_48 = arith.constant 0 : index
      %c0_49 = arith.constant 0 : index
      %80 = vector.load %arg9[%c0_48, %c0_49] : memref<128x1xi32, #tpu.memory_space<vmem>>, vector<128x1xi32>
      tpu.vector_store %arg9[%c0_48, %c0_49], %79 {strides = array<i32>} : memref<128x1xi32, #tpu.memory_space<vmem>>, vector<128x1xi32>,
      %cst_50 = arith.constant 0.000000e+00 : f32
      %81 = vector.broadcast %cst_50 : f32 to vector<128x1xf32>
      %c0_51 = arith.constant 0 : index
      %c0_52 = arith.constant 0 : index
      %82 = vector.load %arg10[%c0_51, %c0_52] : memref<128x1xf32, #tpu.memory_space<vmem>>, vector<128x1xf32>
      tpu.vector_store %arg10[%c0_51, %c0_52], %81 {strides = array<i32>} : memref<128x1xf32, #tpu.memory_space<vmem>>, vector<128x1xf32>,
    } else {
    }
    %c0 = arith.constant 0 : index
    %c0_1 = arith.constant 0 : index
    %3 = vector.load %arg3[%c0, %c0_1] : memref<128x128xf32, #tpu.memory_space<vmem>>, vector<128x128xf32>
    %4 = arith.mulf %3, %3 : vector<128x128xf32>
    %cst = arith.constant dense<0.000000e+00> : vector<128xf32>
    %5 = vector.multi_reduction <add>, %4, %cst [1] : vector<128x128xf32> to vector<128xf32>
    %6 = vector.shape_cast %5 : vector<128xf32> to vector<128x1xf32>
    %cst_2 = arith.constant 1.000000e-24 : f32
    %7 = vector.broadcast %cst_2 : f32 to vector<128x1xf32>
    %8 = arith.maximumf %6, %7 : vector<128x1xf32>
    %9 = math.rsqrt %8 : vector<128x1xf32>
    %10 = vector.broadcast %9 : vector<128x1xf32> to vector<128x128xf32>
    %11 = arith.mulf %3, %10 : vector<128x128xf32>
    %c0_3 = arith.constant 0 : index
    %c0_4 = arith.constant 0 : index
    %12 = vector.load %arg5[%c0_3, %c0_4] : memref<128x128xf32, #tpu.memory_space<vmem>>, vector<128x128xf32>
    %cst_5 = arith.constant dense<0.000000e+00> : vector<128x128xf32>
    %13 = tpu.matmul %12, %11, %cst_5 {dimension_numbers = #tpu.dot_dimension_numbers<[1], [1], [0], [0], [0, 0, 1, 0], [], []>} : vector<128x128xf32>, vector<128x128xf32>, vector<128x128xf32> -> vector<128x128xf32>
    %c128_i32 = arith.constant 128 : i32
    %14 = arith.muli %arg1, %c128_i32 : i32
    %15 = tpu.iota {dimensions = array<i32: 1>} : vector<128x128xi32>
    %16 = vector.broadcast %14 : i32 to vector<128x128xi32>
    %17 = arith.addi %16, %15 : vector<128x128xi32>
    %c8_i32 = arith.constant 8 : i32
    %18 = vector.broadcast %c8_i32 : i32 to vector<128x128xi32>
    %19 = arith.cmpi slt, %17, %18 : vector<128x128xi32>
    %cst_6 = arith.constant 0xFF800000 : f32
    %20 = vector.broadcast %cst_6 : f32 to vector<128x128xf32>
    %21 = arith.select %19, %13, %20 : vector<128x128xi1>, vector<128x128xf32>
    %cst_7 = arith.constant dense<0xFF800000> : vector<128xf32>
    %22 = vector.multi_reduction <maximumf>, %21, %cst_7 [1] : vector<128x128xf32> to vector<128xf32>
    %23 = vector.shape_cast %22 : vector<128xf32> to vector<128x1xf32>
    %c0_8 = arith.constant 0 : index
    %c0_9 = arith.constant 0 : index
    %24 = vector.load %arg6[%c0_8, %c0_9] : memref<128x1xf32, #tpu.memory_space<vmem>>, vector<128x1xf32>
    %25 = arith.maximumf %24, %23 : vector<128x1xf32>
    %26 = arith.subf %24, %25 : vector<128x1xf32>
    %27 = math.exp %26 : vector<128x1xf32>
    %28 = vector.broadcast %25 : vector<128x1xf32> to vector<128x128xf32>
    %29 = arith.subf %21, %28 : vector<128x128xf32>
    %30 = math.exp %29 : vector<128x128xf32>
    %c0_10 = arith.constant 0 : index
    %c0_11 = arith.constant 0 : index
    %31 = vector.load %arg7[%c0_10, %c0_11] : memref<128x1xf32, #tpu.memory_space<vmem>>, vector<128x1xf32>
    %32 = arith.mulf %31, %27 : vector<128x1xf32>
    %cst_12 = arith.constant dense<0.000000e+00> : vector<128xf32>
    %33 = vector.multi_reduction <add>, %30, %cst_12 [1] : vector<128x128xf32> to vector<128xf32>
    %34 = vector.shape_cast %33 : vector<128xf32> to vector<128x1xf32>
    %35 = arith.addf %32, %34 : vector<128x1xf32>
    %c0_13 = arith.constant 0 : index
    %c0_14 = arith.constant 0 : index
    %36 = vector.load %arg7[%c0_13, %c0_14] : memref<128x1xf32, #tpu.memory_space<vmem>>, vector<128x1xf32>
    tpu.vector_store %arg7[%c0_13, %c0_14], %35 {strides = array<i32>} : memref<128x1xf32, #tpu.memory_space<vmem>>, vector<128x1xf32>,
    %37 = vector.broadcast %23 : vector<128x1xf32> to vector<128x128xf32>
    %38 = arith.cmpf oge, %21, %37 : vector<128x128xf32>
    %c1073741824_i32 = arith.constant 1073741824 : i32
    %39 = vector.broadcast %c1073741824_i32 : i32 to vector<128x128xi32>
    %40 = arith.select %38, %17, %39 : vector<128x128xi1>, vector<128x128xi32>
    %cst_15 = arith.constant dense<2147483647> : vector<128xi32>
    %41 = vector.multi_reduction <minsi>, %40, %cst_15 [1] : vector<128x128xi32> to vector<128xi32>
    %42 = vector.shape_cast %41 : vector<128xi32> to vector<128x1xi32>
    %43 = arith.cmpf ogt, %23, %24 : vector<128x1xf32>
    %c0_16 = arith.constant 0 : index
    %c0_17 = arith.constant 0 : index
    %44 = vector.load %arg9[%c0_16, %c0_17] : memref<128x1xi32, #tpu.memory_space<vmem>>, vector<128x1xi32>
    %45 = arith.select %43, %42, %44 : vector<128x1xi1>, vector<128x1xi32>
    %c0_18 = arith.constant 0 : index
    %c0_19 = arith.constant 0 : index
    %46 = vector.load %arg9[%c0_18, %c0_19] : memref<128x1xi32, #tpu.memory_space<vmem>>, vector<128x1xi32>
    tpu.vector_store %arg9[%c0_18, %c0_19], %45 {strides = array<i32>} : memref<128x1xi32, #tpu.memory_space<vmem>>, vector<128x1xi32>,
    %c0_20 = arith.constant 0 : index
    %c0_21 = arith.constant 0 : index
    %47 = vector.load %arg6[%c0_20, %c0_21] : memref<128x1xf32, #tpu.memory_space<vmem>>, vector<128x1xf32>
    tpu.vector_store %arg6[%c0_20, %c0_21], %25 {strides = array<i32>} : memref<128x1xf32, #tpu.memory_space<vmem>>, vector<128x1xf32>,
    %c0_22 = arith.constant 0 : index
    %c0_23 = arith.constant 0 : index
    %48 = vector.load %arg8[%c0_22, %c0_23] : memref<128x1xf32, #tpu.memory_space<vmem>>, vector<128x1xf32>
    %cst_24 = arith.constant 0.000000e+00 : f32
    %49 = vector.broadcast %cst_24 : f32 to vector<128x128xf32>
    %50 = arith.select %19, %13, %49 : vector<128x128xi1>, vector<128x128xf32>
    %cst_25 = arith.constant dense<0.000000e+00> : vector<128xf32>
    %51 = vector.multi_reduction <add>, %50, %cst_25 [1] : vector<128x128xf32> to vector<128xf32>
    %52 = vector.shape_cast %51 : vector<128xf32> to vector<128x1xf32>
    %53 = arith.addf %48, %52 : vector<128x1xf32>
    %c0_26 = arith.constant 0 : index
    %c0_27 = arith.constant 0 : index
    %54 = vector.load %arg8[%c0_26, %c0_27] : memref<128x1xf32, #tpu.memory_space<vmem>>, vector<128x1xf32>
    tpu.vector_store %arg8[%c0_26, %c0_27], %53 {strides = array<i32>} : memref<128x1xf32, #tpu.memory_space<vmem>>, vector<128x1xf32>,
    %55 = arith.cmpi eq, %arg1, %arg0 : i32
    %56 = arith.extui %55 : i1 to i32
    %c0_i32_28 = arith.constant 0 : i32
    %57 = arith.cmpi ne, %56, %c0_i32_28 : i32
    scf.if %57 {
      %61 = arith.mulf %12, %11 : vector<128x128xf32>
      %cst_31 = arith.constant dense<0.000000e+00> : vector<128xf32>
      %62 = vector.multi_reduction <add>, %61, %cst_31 [1] : vector<128x128xf32> to vector<128xf32>
      %63 = vector.shape_cast %62 : vector<128xf32> to vector<128x1xf32>
      %c0_32 = arith.constant 0 : index
      %c0_33 = arith.constant 0 : index
      %64 = vector.load %arg10[%c0_32, %c0_33] : memref<128x1xf32, #tpu.memory_space<vmem>>, vector<128x1xf32>
      tpu.vector_store %arg10[%c0_32, %c0_33], %63 {strides = array<i32>} : memref<128x1xf32, #tpu.memory_space<vmem>>, vector<128x1xf32>,
    } else {
    }
    %c0_i32_29 = arith.constant 0 : i32
    %58 = arith.cmpi eq, %arg1, %c0_i32_29 : i32
    %59 = arith.extui %58 : i1 to i32
    %c0_i32_30 = arith.constant 0 : i32
    %60 = arith.cmpi ne, %59, %c0_i32_30 : i32
    scf.if %60 {
      %c128_i32_31 = arith.constant 128 : i32
      %61 = arith.muli %arg0, %c128_i32_31 : i32
      %62 = tpu.iota {dimensions = array<i32: 0>} : vector<128x1xi32>
      %63 = vector.broadcast %61 : i32 to vector<128x1xi32>
      %64 = arith.addi %63, %62 : vector<128x1xi32>
      %c8_i32_32 = arith.constant 8 : i32
      %65 = vector.broadcast %c8_i32_32 : i32 to vector<128x1xi32>
      %66 = arith.cmpi slt, %64, %65 : vector<128x1xi32>
      %c0_33 = arith.constant 0 : index
      %c0_34 = arith.constant 0 : index
      %67 = vector.load %arg6[%c0_33, %c0_34] : memref<128x1xf32, #tpu.memory_space<vmem>>, vector<128x1xf32>
      %c0_35 = arith.constant 0 : index
      %c0_36 = arith.constant 0 : index
      %68 = vector.load %arg7[%c0_35, %c0_36] : memref<128x1xf32, #tpu.memory_space<vmem>>, vector<128x1xf32>
      %69 = math.log %68 : vector<128x1xf32>
      %70 = arith.addf %67, %69 : vector<128x1xf32>
      %c0_37 = arith.constant 0 : index
      %c0_38 = arith.constant 0 : index
      %71 = vector.load %arg10[%c0_37, %c0_38] : memref<128x1xf32, #tpu.memory_space<vmem>>, vector<128x1xf32>
      %72 = arith.subf %70, %71 : vector<128x1xf32>
      %cst_39 = arith.constant 0.000000e+00 : f32
      %73 = vector.broadcast %cst_39 : f32 to vector<128x1xf32>
      %74 = arith.select %66, %72, %73 : vector<128x1xi1>, vector<128x1xf32>
      %c0_40 = arith.constant 0 : index
      %c0_41 = arith.constant 0 : index
      %75 = vector.load %arg9[%c0_40, %c0_41] : memref<128x1xi32, #tpu.memory_space<vmem>>, vector<128x1xi32>
      %76 = arith.cmpi eq, %75, %64 : vector<128x1xi32>
      %77 = arith.andi %66, %76 : vector<128x1xi1>
      %cst_42 = arith.constant 1.000000e+00 : f32
      %cst_43 = arith.constant 0.000000e+00 : f32
      %78 = vector.broadcast %cst_42 : f32 to vector<128x1xf32>
      %79 = vector.broadcast %cst_43 : f32 to vector<128x1xf32>
      %80 = arith.select %77, %78, %79 : vector<128x1xi1>, vector<128x1xf32>
      %cst_44 = arith.constant 0.000000e+00 : f32
      %81 = vector.broadcast %cst_44 : f32 to vector<128x1xf32>
      %82 = arith.select %66, %71, %81 : vector<128x1xi1>, vector<128x1xf32>
      %c0_45 = arith.constant 0 : index
      %c0_46 = arith.constant 0 : index
      %83 = vector.load %arg8[%c0_45, %c0_46] : memref<128x1xf32, #tpu.memory_space<vmem>>, vector<128x1xf32>
      %cst_47 = arith.constant 0.000000e+00 : f32
      %84 = vector.broadcast %cst_47 : f32 to vector<128x1xf32>
      %85 = arith.select %66, %83, %84 : vector<128x1xi1>, vector<128x1xf32>
      %86 = tpu.concatenate %74, %80, %82, %85 in 1 : vector<128x1xf32>, vector<128x1xf32>, vector<128x1xf32>, vector<128x1xf32> -> vector<128x4xf32>
      %c0_48 = arith.constant 0 : index
      %c0_49 = arith.constant 0 : index
      %87 = vector.load %arg4[%c0_48, %c0_49] : memref<128x4xf32, #tpu.memory_space<vmem>>, vector<128x4xf32>
      tpu.vector_store %arg4[%c0_48, %c0_49], %86 {strides = array<i32>} : memref<128x4xf32, #tpu.memory_space<vmem>>, vector<128x4xf32>,
    } else {
    }
    return
  }
  func.func @transform_0(%arg0: i32, %arg1: i32) -> (i32, i32) {
    %c0_i32 = arith.constant 0 : i32
    %c0_i32_0 = arith.constant 0 : i32
    return %arg0, %c0_i32 : i32, i32
  }
  func.func @transform_1(%arg0: i32, %arg1: i32) -> (i32, i32) {
    %c0_i32 = arith.constant 0 : i32
    %c0_i32_0 = arith.constant 0 : i32
    return %arg1, %c0_i32 : i32, i32
  }
  func.func @transform_2(%arg0: i32, %arg1: i32) -> (i32, i32) {
    %c0_i32 = arith.constant 0 : i32
    %c0_i32_0 = arith.constant 0 : i32
    return %arg0, %c0_i32 : i32, i32
  }
}

</mosaic_0001>

<llo_original>
// kernel: tpu_custom_call.1
$region0: #{tpu_custom_call.1}
  #allocation0 [shape = 'u32[]', space=smem, size = 0x4, offset = 0x4, fixed_abs, tag = 'smem constant byte address 0x4 - core index']
  #allocation1 [shape = 'u32[144,128]{1,0:T(1,128)}', space=vmem, size = 0x12000, scoped, tag = 'internal scratch']
  #allocation2 [shape = 'f32[128,128]{1,0:T(8,128)}', space=vmem, size = 0x10000, scoped, tag = 'scratch operand']
  #allocation3 [shape = 'f32[128,1]{1,0:T(8,128)}', space=vmem, size = 0x10000, scoped, tag = 'scratch operand']
  #allocation4 [shape = 'f32[128,1]{1,0:T(8,128)}', space=vmem, size = 0x10000, scoped, tag = 'scratch operand']
  #allocation5 [shape = 'f32[128,1]{1,0:T(8,128)}', space=vmem, size = 0x10000, scoped, tag = 'scratch operand']
  #allocation6 [shape = 's32[128,1]{1,0:T(8,128)}', space=vmem, size = 0x10000, scoped, tag = 'scratch operand']
  #allocation7 [shape = 'f32[128,1]{1,0:T(8,128)}', space=vmem, size = 0x10000, scoped, tag = 'scratch operand']
  %s0 = inlined_call_operand.hbm [shape: f32[128,128], index: 0, kind: input, shape index: {}]
  %s1 = inlined_call_operand.hbm [shape: f32[128,128], index: 1, kind: input, shape index: {}]
  %s2 = inlined_call_operand.vmem [shape: f32[128,4], index: 2, kind: output, shape index: {}]
  %s3 = sld [smem:[#allocation0]]
  $region38: #{tpu_custom_call.1} parent=0
    _
  %s5 = ssub.s32 1, %s3
  %s6 = scalar_select 0, %s5, %s3
  $region1: #{tpu_custom_call.1} parent=0
    #allocation8 [shape = 'u8[65536]{0}', space=vmem, size = 0x10000, scoped, tag = 'input window, operand 0, single buffered']
    #allocation9 [shape = 's32[1]{0}', space=sflag, size = 0x4, scoped, tag = 'scoped memory for tpu_custom_call.1']
    #allocation10 [shape = 'u8[65536]{0}', space=vmem, size = 0x10000, scoped, tag = 'input window, operand 1, single buffered']
    #allocation11 [shape = 's32[1]{0}', space=sflag, size = 0x4, scoped, tag = 'scoped memory for tpu_custom_call.1']
    %7 = vsyncpa [#allocation9], 0
    %8 = vsyncpa [#allocation11], 0
    // Predicated region
    $region2: #{tpu_custom_call.1} parent=1 // pred_check
      _
    $region3: #{tpu_custom_call.1} parent=1 // pred_check_branch
      %10 = sbr.rel (0) target = $region5
    $region4: #{tpu_custom_call.1} parent=1 // pred_region
      %s12 = ssub.s32 2048, 2048
      %13 = vsyncadd [#allocation9], %s12
      %s14 = sshll.u32 [#allocation8], 4
      %s15 = int_to_ptr.vmem [resolvable:$true] %s14
      %20 = dma.hbm_to_vmem [thread:$0]  %s0, 2048, %s15, [#allocation9], 128, 128, 8
    $region5: #{tpu_custom_call.1} parent=1 // pred_fallthru
      _
    // Predicated region
    $region6: #{tpu_custom_call.1} parent=1 // pred_check
      _
    $region7: #{tpu_custom_call.1} parent=1 // pred_check_branch
      %22 = sbr.rel (0) target = $region9
    $region8: #{tpu_custom_call.1} parent=1 // pred_region
      %s24 = ssub.s32 2048, 2048
      %25 = vsyncadd [#allocation11], %s24
      %s26 = sshll.u32 [#allocation10], 4
      %s27 = int_to_ptr.vmem [resolvable:$true] %s26
      %32 = dma.hbm_to_vmem [thread:$0]  %s1, 2048, %s27, [#allocation11], 128, 128, 8
    $region9: #{tpu_custom_call.1} parent=1 // pred_fallthru
      _
    // Predicated region
    $region10: #{tpu_custom_call.1} parent=1 // pred_check
      _
    $region11: #{tpu_custom_call.1} parent=1 // pred_check_branch
      %34 = sbr.rel (0) target = $region13
    $region12: #{tpu_custom_call.1} parent=1 // pred_region
      %35 = dma.done [#allocation9], 2048
    $region13: #{tpu_custom_call.1} parent=1 // pred_fallthru
      _
    // Predicated region
    $region14: #{tpu_custom_call.1} parent=1 // pred_check
      _
    $region15: #{tpu_custom_call.1} parent=1 // pred_check_branch
      %37 = sbr.rel (0) target = $region17
    $region16: #{tpu_custom_call.1} parent=1 // pred_region
      %38 = dma.done [#allocation11], 2048
    $region17: #{tpu_custom_call.1} parent=1 // pred_fallthru
      _
    %p39 = scmp.eq.s32.totalorder 0, 0
    // Predicated region
    $region18: #{tpu_custom_call.1} parent=1 // pred_check
      %p40 = pneg %p39
    $region19: #{tpu_custom_call.1} parent=1 // pred_check_branch
      %42 = sbr.rel (%p40) target = $region21
    $region20: #{tpu_custom_call.1} parent=1 // pred_region
      %v43 = vld [vmem:[#allocation8] sm:$0xff]
      %v44 = vld [vmem:[#allocation8 + $0x8] sm:$0xff]
      %v45 = vld [vmem:[#allocation8 + $0x10] sm:$0xff]
      %v46 = vld [vmem:[#allocation8 + $0x18] sm:$0xff]
      %v47 = vld [vmem:[#allocation8 + $0x20] sm:$0xff]
      %v48 = vld [vmem:[#allocation8 + $0x28] sm:$0xff]
      %v49 = vld [vmem:[#allocation8 + $0x30] sm:$0xff]
      %v50 = vld [vmem:[#allocation8 + $0x38] sm:$0xff]
      %v51 = vld [vmem:[#allocation8 + $0x40] sm:$0xff]
      %v52 = vld [vmem:[#allocation8 + $0x48] sm:$0xff]
      %v53 = vld [vmem:[#allocation8 + $0x50] sm:$0xff]
      %v54 = vld [vmem:[#allocation8 + $0x58] sm:$0xff]
      %v55 = vld [vmem:[#allocation8 + $0x60] sm:$0xff]
      %v56 = vld [vmem:[#allocation8 + $0x68] sm:$0xff]
      %v57 = vld [vmem:[#allocation8 + $0x70] sm:$0xff]
      %v58 = vld [vmem:[#allocation8 + $0x78] sm:$0xff]
      %v59 = vmul.f32 %v43, %v43
      %v60 = vmul.f32 %v44, %v44
      %v61 = vmul.f32 %v45, %v45
      %v62 = vmul.f32 %v46, %v46
      %v63 = vmul.f32 %v47, %v47
      %v64 = vmul.f32 %v48, %v48
      %v65 = vmul.f32 %v49, %v49
      %v66 = vmul.f32 %v50, %v50
      %v67 = vmul.f32 %v51, %v51
      %v68 = vmul.f32 %v52, %v52
      %v69 = vmul.f32 %v53, %v53
      %v70 = vmul.f32 %v54, %v54
      %v71 = vmul.f32 %v55, %v55
      %v72 = vmul.f32 %v56, %v56
      %v73 = vmul.f32 %v57, %v57
      %v74 = vmul.f32 %v58, %v58
      %75 = vadd.xlane.f32.xlu0 %v59
      %v76 = vpop.xlane.xlu0 %75
      %77 = vadd.xlane.f32.xlu0 %v60
      %v78 = vpop.xlane.xlu0 %77
      %79 = vadd.xlane.f32.xlu0 %v61
      %v80 = vpop.xlane.xlu0 %79
      %81 = vadd.xlane.f32.xlu0 %v62
      %v82 = vpop.xlane.xlu0 %81
      %83 = vadd.xlane.f32.xlu0 %v63
      %v84 = vpop.xlane.xlu0 %83
      %85 = vadd.xlane.f32.xlu0 %v64
      %v86 = vpop.xlane.xlu0 %85
      %87 = vadd.xlane.f32.xlu0 %v65
      %v88 = vpop.xlane.xlu0 %87
      %89 = vadd.xlane.f32.xlu0 %v66
      %v90 = vpop.xlane.xlu0 %89
      %91 = vadd.xlane.f32.xlu0 %v67
      %v92 = vpop.xlane.xlu0 %91
      %93 = vadd.xlane.f32.xlu0 %v68
      %v94 = vpop.xlane.xlu0 %93
      %95 = vadd.xlane.f32.xlu0 %v69
      %v96 = vpop.xlane.xlu0 %95
      %97 = vadd.xlane.f32.xlu0 %v70
      %v98 = vpop.xlane.xlu0 %97
      %99 = vadd.xlane.f32.xlu0 %v71
      %v100 = vpop.xlane.xlu0 %99
      %101 = vadd.xlane.f32.xlu0 %v72
      %v102 = vpop.xlane.xlu0 %101
      %103 = vadd.xlane.f32.xlu0 %v73
      %v104 = vpop.xlane.xlu0 %103
      %105 = vadd.xlane.f32.xlu0 %v74
      %v106 = vpop.xlane.xlu0 %105
      %v107 = vmax.f32 %v76, 1e-24
      %v108 = vmax.f32 %v78, 1e-24
      %v109 = vmax.f32 %v80, 1e-24
      %v110 = vmax.f32 %v82, 1e-24
      %v111 = vmax.f32 %v84, 1e-24
      %v112 = vmax.f32 %v86, 1e-24
      %v113 = vmax.f32 %v88, 1e-24
      %v114 = vmax.f32 %v90, 1e-24
      %v115 = vmax.f32 %v92, 1e-24
      %v116 = vmax.f32 %v94, 1e-24
      %v117 = vmax.f32 %v96, 1e-24
      %v118 = vmax.f32 %v98, 1e-24
      %v119 = vmax.f32 %v100, 1e-24
      %v120 = vmax.f32 %v102, 1e-24
      %v121 = vmax.f32 %v104, 1e-24
      %v122 = vmax.f32 %v106, 1e-24
      %v123 = vrsqrt.pop %v107
      %v124 = vrsqrt.pop %v108
      %v125 = vrsqrt.pop %v109
      %v126 = vrsqrt.pop %v110
      %v127 = vrsqrt.pop %v111
      %v128 = vrsqrt.pop %v112
      %v129 = vrsqrt.pop %v113
      %v130 = vrsqrt.pop %v114
      %v131 = vrsqrt.pop %v115
      %v132 = vrsqrt.pop %v116
      %v133 = vrsqrt.pop %v117
      %v134 = vrsqrt.pop %v118
      %v135 = vrsqrt.pop %v119
      %v136 = vrsqrt.pop %v120
      %v137 = vrsqrt.pop %v121
      %v138 = vrsqrt.pop %v122
      %v139 = vmul.f32 %v123, 20.0
      %v140 = vmul.f32 %v124, 20.0
      %v141 = vmul.f32 %v125, 20.0
      %v142 = vmul.f32 %v126, 20.0
      %v143 = vmul.f32 %v127, 20.0
      %v144 = vmul.f32 %v128, 20.0
      %v145 = vmul.f32 %v129, 20.0
      %v146 = vmul.f32 %v130, 20.0
      %v147 = vmul.f32 %v131, 20.0
      %v148 = vmul.f32 %v132, 20.0
      %v149 = vmul.f32 %v133, 20.0
      %v150 = vmul.f32 %v134, 20.0
      %v151 = vmul.f32 %v135, 20.0
      %v152 = vmul.f32 %v136, 20.0
      %v153 = vmul.f32 %v137, 20.0
      %v154 = vmul.f32 %v138, 20.0
      %v155 = vmul.f32 %v43, %v139
      %v156 = vmul.f32 %v44, %v140
      %v157 = vmul.f32 %v45, %v141
      %v158 = vmul.f32 %v46, %v142
      %v159 = vmul.f32 %v47, %v143
      %v160 = vmul.f32 %v48, %v144
      %v161 = vmul.f32 %v49, %v145
      %v162 = vmul.f32 %v50, %v146
      %v163 = vmul.f32 %v51, %v147
      %v164 = vmul.f32 %v52, %v148
      %v165 = vmul.f32 %v53, %v149
      %v166 = vmul.f32 %v54, %v150
      %v167 = vmul.f32 %v55, %v151
      %v168 = vmul.f32 %v56, %v152
      %v169 = vmul.f32 %v57, %v153
      %v170 = vmul.f32 %v58, %v154
      %171 = vst [vmem:[#allocation2] sm:$0xff] %v155
      %172 = vst [vmem:[#allocation2 + $0x8] sm:$0xff] %v156
      %173 = vst [vmem:[#allocation2 + $0x10] sm:$0xff] %v157
      %174 = vst [vmem:[#allocation2 + $0x18] sm:$0xff] %v158
      %175 = vst [vmem:[#allocation2 + $0x20] sm:$0xff] %v159
      %176 = vst [vmem:[#allocation2 + $0x28] sm:$0xff] %v160
      %177 = vst [vmem:[#allocation2 + $0x30] sm:$0xff] %v161
      %178 = vst [vmem:[#allocation2 + $0x38] sm:$0xff] %v162
      %179 = vst [vmem:[#allocation2 + $0x40] sm:$0xff] %v163
      %180 = vst [vmem:[#allocation2 + $0x48] sm:$0xff] %v164
      %181 = vst [vmem:[#allocation2 + $0x50] sm:$0xff] %v165
      %182 = vst [vmem:[#allocation2 + $0x58] sm:$0xff] %v166
      %183 = vst [vmem:[#allocation2 + $0x60] sm:$0xff] %v167
      %184 = vst [vmem:[#allocation2 + $0x68] sm:$0xff] %v168
      %185 = vst [vmem:[#allocation2 + $0x70] sm:$0xff] %v169
      %186 = vst [vmem:[#allocation2 + $0x78] sm:$0xff] %v170
      %vm187 = vcmask 7168
      %188 = vst.msk [vmem:[#allocation3] sm:$0xff] %vm187, -inf
      %189 = vst.msk [vmem:[#allocation3 + $0x8] sm:$0xff] %vm187, -inf
      %190 = vst.msk [vmem:[#allocation3 + $0x10] sm:$0xff] %vm187, -inf
      %191 = vst.msk [vmem:[#allocation3 + $0x18] sm:$0xff] %vm187, -inf
      %192 = vst.msk [vmem:[#allocation3 + $0x20] sm:$0xff] %vm187, -inf
      %193 = vst.msk [vmem:[#allocation3 + $0x28] sm:$0xff] %vm187, -inf
      %194 = vst.msk [vmem:[#allocation3 + $0x30] sm:$0xff] %vm187, -inf
      %195 = vst.msk [vmem:[#allocation3 + $0x38] sm:$0xff] %vm187, -inf
      %196 = vst.msk [vmem:[#allocation3 + $0x40] sm:$0xff] %vm187, -inf
      %197 = vst.msk [vmem:[#allocation3 + $0x48] sm:$0xff] %vm187, -inf
      %198 = vst.msk [vmem:[#allocation3 + $0x50] sm:$0xff] %vm187, -inf
      %199 = vst.msk [vmem:[#allocation3 + $0x58] sm:$0xff] %vm187, -inf
      %200 = vst.msk [vmem:[#allocation3 + $0x60] sm:$0xff] %vm187, -inf
      %201 = vst.msk [vmem:[#allocation3 + $0x68] sm:$0xff] %vm187, -inf
      %202 = vst.msk [vmem:[#allocation3 + $0x70] sm:$0xff] %vm187, -inf
      %203 = vst.msk [vmem:[#allocation3 + $0x78] sm:$0xff] %vm187, -inf
      %204 = vst.msk [vmem:[#allocation4] sm:$0xff] %vm187, 0.0
      %205 = vst.msk [vmem:[#allocation4 + $0x8] sm:$0xff] %vm187, 0.0
      %206 = vst.msk [vmem:[#allocation4 + $0x10] sm:$0xff] %vm187, 0.0
      %207 = vst.msk [vmem:[#allocation4 + $0x18] sm:$0xff] %vm187, 0.0
      %208 = vst.msk [vmem:[#allocation4 + $0x20] sm:$0xff] %vm187, 0.0
      %209 = vst.msk [vmem:[#allocation4 + $0x28] sm:$0xff] %vm187, 0.0
      %210 = vst.msk [vmem:[#allocation4 + $0x30] sm:$0xff] %vm187, 0.0
      %211 = vst.msk [vmem:[#allocation4 + $0x38] sm:$0xff] %vm187, 0.0
      %212 = vst.msk [vmem:[#allocation4 + $0x40] sm:$0xff] %vm187, 0.0
      %213 = vst.msk [vmem:[#allocation4 + $0x48] sm:$0xff] %vm187, 0.0
      %214 = vst.msk [vmem:[#allocation4 + $0x50] sm:$0xff] %vm187, 0.0
      %215 = vst.msk [vmem:[#allocation4 + $0x58] sm:$0xff] %vm187, 0.0
      %216 = vst.msk [vmem:[#allocation4 + $0x60] sm:$0xff] %vm187, 0.0
      %217 = vst.msk [vmem:[#allocation4 + $0x68] sm:$0xff] %vm187, 0.0
      %218 = vst.msk [vmem:[#allocation4 + $0x70] sm:$0xff] %vm187, 0.0
      %219 = vst.msk [vmem:[#allocation4 + $0x78] sm:$0xff] %vm187, 0.0
      %220 = vst.msk [vmem:[#allocation5] sm:$0xff] %vm187, 0.0
      %221 = vst.msk [vmem:[#allocation5 + $0x8] sm:$0xff] %vm187, 0.0
      %222 = vst.msk [vmem:[#allocation5 + $0x10] sm:$0xff] %vm187, 0.0
      %223 = vst.msk [vmem:[#allocation5 + $0x18] sm:$0xff] %vm187, 0.0
      %224 = vst.msk [vmem:[#allocation5 + $0x20] sm:$0xff] %vm187, 0.0
      %225 = vst.msk [vmem:[#allocation5 + $0x28] sm:$0xff] %vm187, 0.0
      %226 = vst.msk [vmem:[#allocation5 + $0x30] sm:$0xff] %vm187, 0.0
      %227 = vst.msk [vmem:[#allocation5 + $0x38] sm:$0xff] %vm187, 0.0
      %228 = vst.msk [vmem:[#allocation5 + $0x40] sm:$0xff] %vm187, 0.0
      %229 = vst.msk [vmem:[#allocation5 + $0x48] sm:$0xff] %vm187, 0.0
      %230 = vst.msk [vmem:[#allocation5 + $0x50] sm:$0xff] %vm187, 0.0
      %231 = vst.msk [vmem:[#allocation5 + $0x58] sm:$0xff] %vm187, 0.0
      %232 = vst.msk [vmem:[#allocation5 + $0x60] sm:$0xff] %vm187, 0.0
      %233 = vst.msk [vmem:[#allocation5 + $0x68] sm:$0xff] %vm187, 0.0
      %234 = vst.msk [vmem:[#allocation5 + $0x70] sm:$0xff] %vm187, 0.0
      %235 = vst.msk [vmem:[#allocation5 + $0x78] sm:$0xff] %vm187, 0.0
      %236 = vst.msk [vmem:[#allocation6] sm:$0xff] %vm187, 0
      %237 = vst.msk [vmem:[#allocation6 + $0x8] sm:$0xff] %vm187, 0
      %238 = vst.msk [vmem:[#allocation6 + $0x10] sm:$0xff] %vm187, 0
      %239 = vst.msk [vmem:[#allocation6 + $0x18] sm:$0xff] %vm187, 0
      %240 = vst.msk [vmem:[#allocation6 + $0x20] sm:$0xff] %vm187, 0
      %241 = vst.msk [vmem:[#allocation6 + $0x28] sm:$0xff] %vm187, 0
      %242 = vst.msk [vmem:[#allocation6 + $0x30] sm:$0xff] %vm187, 0
      %243 = vst.msk [vmem:[#allocation6 + $0x38] sm:$0xff] %vm187, 0
      %244 = vst.msk [vmem:[#allocation6 + $0x40] sm:$0xff] %vm187, 0
      %245 = vst.msk [vmem:[#allocation6 + $0x48] sm:$0xff] %vm187, 0
      %246 = vst.msk [vmem:[#allocation6 + $0x50] sm:$0xff] %vm187, 0
      %247 = vst.msk [vmem:[#allocation6 + $0x58] sm:$0xff] %vm187, 0
      %248 = vst.msk [vmem:[#allocation6 + $0x60] sm:$0xff] %vm187, 0
      %249 = vst.msk [vmem:[#allocation6 + $0x68] sm:$0xff] %vm187, 0
      %250 = vst.msk [vmem:[#allocation6 + $0x70] sm:$0xff] %vm187, 0
      %251 = vst.msk [vmem:[#allocation6 + $0x78] sm:$0xff] %vm187, 0
      %252 = vst.msk [vmem:[#allocation7] sm:$0xff] %vm187, 0.0
      %253 = vst.msk [vmem:[#allocation7 + $0x8] sm:$0xff] %vm187, 0.0
      %254 = vst.msk [vmem:[#allocation7 + $0x10] sm:$0xff] %vm187, 0.0
      %255 = vst.msk [vmem:[#allocation7 + $0x18] sm:$0xff] %vm187, 0.0
      %256 = vst.msk [vmem:[#allocation7 + $0x20] sm:$0xff] %vm187, 0.0
      %257 = vst.msk [vmem:[#allocation7 + $0x28] sm:$0xff] %vm187, 0.0
      %258 = vst.msk [vmem:[#allocation7 + $0x30] sm:$0xff] %vm187, 0.0
      %259 = vst.msk [vmem:[#allocation7 + $0x38] sm:$0xff] %vm187, 0.0
      %260 = vst.msk [vmem:[#allocation7 + $0x40] sm:$0xff] %vm187, 0.0
      %261 = vst.msk [vmem:[#allocation7 + $0x48] sm:$0xff] %vm187, 0.0
      %262 = vst.msk [vmem:[#allocation7 + $0x50] sm:$0xff] %vm187, 0.0
      %263 = vst.msk [vmem:[#allocation7 + $0x58] sm:$0xff] %vm187, 0.0
      %264 = vst.msk [vmem:[#allocation7 + $0x60] sm:$0xff] %vm187, 0.0
      %265 = vst.msk [vmem:[#allocation7 + $0x68] sm:$0xff] %vm187, 0.0
      %266 = vst.msk [vmem:[#allocation7 + $0x70] sm:$0xff] %vm187, 0.0
      %267 = vst.msk [vmem:[#allocation7 + $0x78] sm:$0xff] %vm187, 0.0
    $region21: #{tpu_custom_call.1} parent=1 // pred_fallthru
      _
    %v268 = vld [vmem:[#allocation10] sm:$0xff]
    %v269 = vld [vmem:[#allocation10 + $0x8] sm:$0xff]
    %v270 = vld [vmem:[#allocation10 + $0x10] sm:$0xff]
    %v271 = vld [vmem:[#allocation10 + $0x18] sm:$0xff]
    %v272 = vld [vmem:[#allocation10 + $0x20] sm:$0xff]
    %v273 = vld [vmem:[#allocation10 + $0x28] sm:$0xff]
    %v274 = vld [vmem:[#allocation10 + $0x30] sm:$0xff]
    %v275 = vld [vmem:[#allocation10 + $0x38] sm:$0xff]
    %v276 = vld [vmem:[#allocation10 + $0x40] sm:$0xff]
    %v277 = vld [vmem:[#allocation10 + $0x48] sm:$0xff]
    %v278 = vld [vmem:[#allocation10 + $0x50] sm:$0xff]
    %v279 = vld [vmem:[#allocation10 + $0x58] sm:$0xff]
    %v280 = vld [vmem:[#allocation10 + $0x60] sm:$0xff]
    %v281 = vld [vmem:[#allocation10 + $0x68] sm:$0xff]
    %v282 = vld [vmem:[#allocation10 + $0x70] sm:$0xff]
    %v283 = vld [vmem:[#allocation10 + $0x78] sm:$0xff]
    %v284 = vmul.f32 %v268, %v268
    %v285 = vmul.f32 %v269, %v269
    %v286 = vmul.f32 %v270, %v270
    %v287 = vmul.f32 %v271, %v271
    %v288 = vmul.f32 %v272, %v272
    %v289 = vmul.f32 %v273, %v273
    %v290 = vmul.f32 %v274, %v274
    %v291 = vmul.f32 %v275, %v275
    %v292 = vmul.f32 %v276, %v276
    %v293 = vmul.f32 %v277, %v277
    %v294 = vmul.f32 %v278, %v278
    %v295 = vmul.f32 %v279, %v279
    %v296 = vmul.f32 %v280, %v280
    %v297 = vmul.f32 %v281, %v281
    %v298 = vmul.f32 %v282, %v282
    %v299 = vmul.f32 %v283, %v283
    %300 = vadd.xlane.f32.xlu0 %v284
    %v301 = vpop.xlane.xlu0 %300
    %302 = vadd.xlane.f32.xlu0 %v285
    %v303 = vpop.xlane.xlu0 %302
    %304 = vadd.xlane.f32.xlu0 %v286
    %v305 = vpop.xlane.xlu0 %304
    %306 = vadd.xlane.f32.xlu0 %v287
    %v307 = vpop.xlane.xlu0 %306
    %308 = vadd.xlane.f32.xlu0 %v288
    %v309 = vpop.xlane.xlu0 %308
    %310 = vadd.xlane.f32.xlu0 %v289
    %v311 = vpop.xlane.xlu0 %310
    %312 = vadd.xlane.f32.xlu0 %v290
    %v313 = vpop.xlane.xlu0 %312
    %314 = vadd.xlane.f32.xlu0 %v291
    %v315 = vpop.xlane.xlu0 %314
    %316 = vadd.xlane.f32.xlu0 %v292
    %v317 = vpop.xlane.xlu0 %316
    %318 = vadd.xlane.f32.xlu0 %v293
    %v319 = vpop.xlane.xlu0 %318
    %320 = vadd.xlane.f32.xlu0 %v294
    %v321 = vpop.xlane.xlu0 %320
    %322 = vadd.xlane.f32.xlu0 %v295
    %v323 = vpop.xlane.xlu0 %322
    %324 = vadd.xlane.f32.xlu0 %v296
    %v325 = vpop.xlane.xlu0 %324
    %326 = vadd.xlane.f32.xlu0 %v297
    %v327 = vpop.xlane.xlu0 %326
    %328 = vadd.xlane.f32.xlu0 %v298
    %v329 = vpop.xlane.xlu0 %328
    %330 = vadd.xlane.f32.xlu0 %v299
    %v331 = vpop.xlane.xlu0 %330
    %v332 = vmax.f32 %v301, 1e-24
    %v333 = vmax.f32 %v303, 1e-24
    %v334 = vmax.f32 %v305, 1e-24
    %v335 = vmax.f32 %v307, 1e-24
    %v336 = vmax.f32 %v309, 1e-24
    %v337 = vmax.f32 %v311, 1e-24
    %v338 = vmax.f32 %v313, 1e-24
    %v339 = vmax.f32 %v315, 1e-24
    %v340 = vmax.f32 %v317, 1e-24
    %v341 = vmax.f32 %v319, 1e-24
    %v342 = vmax.f32 %v321, 1e-24
    %v343 = vmax.f32 %v323, 1e-24
    %v344 = vmax.f32 %v325, 1e-24
    %v345 = vmax.f32 %v327, 1e-24
    %v346 = vmax.f32 %v329, 1e-24
    %v347 = vmax.f32 %v331, 1e-24
    %v348 = vrsqrt.pop %v332
    %v349 = vrsqrt.pop %v333
    %v350 = vrsqrt.pop %v334
    %v351 = vrsqrt.pop %v335
    %v352 = vrsqrt.pop %v336
    %v353 = vrsqrt.pop %v337
    %v354 = vrsqrt.pop %v338
    %v355 = vrsqrt.pop %v339
    %v356 = vrsqrt.pop %v340
    %v357 = vrsqrt.pop %v341
    %v358 = vrsqrt.pop %v342
    %v359 = vrsqrt.pop %v343
    %v360 = vrsqrt.pop %v344
    %v361 = vrsqrt.pop %v345
    %v362 = vrsqrt.pop %v346
    %v363 = vrsqrt.pop %v347
    %v364 = vmul.f32 %v268, %v348
    %v365 = vmul.f32 %v269, %v349
    %v366 = vmul.f32 %v270, %v350
    %v367 = vmul.f32 %v271, %v351
    %v368 = vmul.f32 %v272, %v352
    %v369 = vmul.f32 %v273, %v353
    %v370 = vmul.f32 %v274, %v354
    %v371 = vmul.f32 %v275, %v355
    %v372 = vmul.f32 %v276, %v356
    %v373 = vmul.f32 %v277, %v357
    %v374 = vmul.f32 %v278, %v358
    %v375 = vmul.f32 %v279, %v359
    %v376 = vmul.f32 %v280, %v360
    %v377 = vmul.f32 %v281, %v361
    %v378 = vmul.f32 %v282, %v362
    %v379 = vmul.f32 %v283, %v363
    %v380 = vld [vmem:[#allocation2] sm:$0xff]
    %v381 = vld [vmem:[#allocation2 + $0x8] sm:$0xff]
    %v382 = vld [vmem:[#allocation2 + $0x10] sm:$0xff]
    %v383 = vld [vmem:[#allocation2 + $0x18] sm:$0xff]
    %v384 = vld [vmem:[#allocation2 + $0x20] sm:$0xff]
    %v385 = vld [vmem:[#allocation2 + $0x28] sm:$0xff]
    %v386 = vld [vmem:[#allocation2 + $0x30] sm:$0xff]
    %v387 = vld [vmem:[#allocation2 + $0x38] sm:$0xff]
    %v388 = vld [vmem:[#allocation2 + $0x40] sm:$0xff]
    %v389 = vld [vmem:[#allocation2 + $0x48] sm:$0xff]
    %v390 = vld [vmem:[#allocation2 + $0x50] sm:$0xff]
    %v391 = vld [vmem:[#allocation2 + $0x58] sm:$0xff]
    %v392 = vld [vmem:[#allocation2 + $0x60] sm:$0xff]
    %v393 = vld [vmem:[#allocation2 + $0x68] sm:$0xff]
    %v394 = vld [vmem:[#allocation2 + $0x70] sm:$0xff]
    %v395 = vld [vmem:[#allocation2 + $0x78] sm:$0xff]
    %396 = vmatprep.subr.mxu0 0.0
    %397 = vmatpush1.xpose.msra.mxu0 %v364
    %398 = vmatprep.subr.mxu0 0.0
    %399 = vmatpush1.xpose.msra.mxu0 %v365
    %400 = vmatprep.subr.mxu0 0.0
    %401 = vmatpush1.xpose.msra.mxu0 %v366
    %402 = vmatprep.subr.mxu0 0.0
    %403 = vmatpush1.xpose.msra.mxu0 %v367
    %404 = vmatprep.subr.mxu0 0.0
    %405 = vmatpush1.xpose.msra.mxu0 %v368
    %406 = vmatprep.subr.mxu0 0.0
    %407 = vmatpush1.xpose.msra.mxu0 %v369
    %408 = vmatprep.subr.mxu0 0.0
    %409 = vmatpush1.xpose.msra.mxu0 %v370
    %410 = vmatprep.subr.mxu0 0.0
    %411 = vmatpush1.xpose.msra.mxu0 %v371
    %412 = vmatprep.subr.mxu0 0.0
    %413 = vmatpush1.xpose.msra.mxu0 %v372
    %414 = vmatprep.subr.mxu0 0.0
    %415 = vmatpush1.xpose.msra.mxu0 %v373
    %416 = vmatprep.subr.mxu0 0.0
    %417 = vmatpush1.xpose.msra.mxu0 %v374
    %418 = vmatprep.subr.mxu0 0.0
    %419 = vmatpush1.xpose.msra.mxu0 %v375
    %420 = vmatprep.subr.mxu0 0.0
    %421 = vmatpush1.xpose.msra.mxu0 %v376
    %422 = vmatprep.subr.mxu0 0.0
    %423 = vmatpush1.xpose.msra.mxu0 %v377
    %424 = vmatprep.subr.mxu0 0.0
    %425 = vmatpush1.xpose.msra.mxu0 %v378
    %426 = vmatprep.subr.mxu0 0.0
    %427 = vmatpush1.xpose.msra.mxu0 %v379
    %428 = vmatprep.subr.mxu0 0.0
    %429 = vmatpush1.xpose.msra.mxu0 0.0
    %430 = vmatprep.subr.mxu0 0.0
    %431 = vmatpush1.xpose.msra.mxu0 0.0
    %432 = vmatprep.subr.mxu0 0.0
    %433 = vmatpush1.xpose.msra.mxu0 0.0
    %434 = vmatprep.subr.mxu0 0.0
    %435 = vmatpush1.xpose.msra.mxu0 0.0
    %436 = vmatprep.subr.mxu0 0.0
    %437 = vmatpush1.xpose.msra.mxu0 0.0
    %438 = vmatprep.subr.mxu0 0.0
    %439 = vmatpush1.xpose.msra.mxu0 0.0
    %440 = vmatprep.subr.mxu0 0.0
    %441 = vmatpush1.xpose.msra.mxu0 0.0
    %442 = vmatprep.subr.mxu0 0.0
    %443 = vmatpush1.xpose.msra.mxu0 0.0
    %444 = vmatprep.subr.mxu0 0.0
    %445 = vmatpush1.xpose.msra.mxu0 0.0
    %446 = vmatprep.subr.mxu0 0.0
    %447 = vmatpush1.xpose.msra.mxu0 0.0
    %448 = vmatprep.subr.mxu0 0.0
    %449 = vmatpush1.xpose.msra.mxu0 0.0
    %450 = vmatprep.subr.mxu0 0.0
    %451 = vmatpush1.xpose.msra.mxu0 0.0
    %452 = vmatprep.subr.mxu0 0.0
    %453 = vmatpush1.xpose.msra.mxu0 0.0
    %454 = vmatprep.subr.mxu0 0.0
    %455 = vmatpush1.xpose.msra.mxu0 0.0
    %456 = vmatprep.subr.mxu0 0.0
    %457 = vmatpush1.xpose.msra.mxu0 0.0
    %458 = vmatprep.subr.mxu0 0.0
    %459 = vmatpush1.xpose.msra.mxu0 0.0
    %460 = vmatprep.mubr.f32.mxu0 0.0
    %461 = vmatmul.mubr.f32.gmra.mrb[0].mxu0 %v380
    %v462 = vpop.f32.mrb[0].mxu0
    %v463 = vadd.f32 0.0, %v462
    %v464 = vpop.f32.mrb[0].mxu0
    %465 = vmatprep.mubr.f32.mxu0 0.0
    %466 = vmatmul.mubr.f32.gmra.mrb[0].mxu0 %v381
    %v467 = vpop.f32.mrb[0].mxu0
    %v468 = vadd.f32 0.0, %v467
    %v469 = vpop.f32.mrb[0].mxu0
    %470 = vmatprep.mubr.f32.mxu0 0.0
    %471 = vmatmul.mubr.f32.gmra.mrb[0].mxu0 %v382
    %v472 = vpop.f32.mrb[0].mxu0
    %v473 = vadd.f32 0.0, %v472
    %v474 = vpop.f32.mrb[0].mxu0
    %475 = vmatprep.mubr.f32.mxu0 0.0
    %476 = vmatmul.mubr.f32.gmra.mrb[0].mxu0 %v383
    %v477 = vpop.f32.mrb[0].mxu0
    %v478 = vadd.f32 0.0, %v477
    %v479 = vpop.f32.mrb[0].mxu0
    %480 = vmatprep.mubr.f32.mxu0 0.0
    %481 = vmatmul.mubr.f32.gmra.mrb[0].mxu0 %v384
    %v482 = vpop.f32.mrb[0].mxu0
    %v483 = vadd.f32 0.0, %v482
    %v484 = vpop.f32.mrb[0].mxu0
    %485 = vmatprep.mubr.f32.mxu0 0.0
    %486 = vmatmul.mubr.f32.gmra.mrb[0].mxu0 %v385
    %v487 = vpop.f32.mrb[0].mxu0
    %v488 = vadd.f32 0.0, %v487
    %v489 = vpop.f32.mrb[0].mxu0
    %490 = vmatprep.mubr.f32.mxu0 0.0
    %491 = vmatmul.mubr.f32.gmra.mrb[0].mxu0 %v386
    %v492 = vpop.f32.mrb[0].mxu0
    %v493 = vadd.f32 0.0, %v492
    %v494 = vpop.f32.mrb[0].mxu0
    %495 = vmatprep.mubr.f32.mxu0 0.0
    %496 = vmatmul.mubr.f32.gmra.mrb[0].mxu0 %v387
    %v497 = vpop.f32.mrb[0].mxu0
    %v498 = vadd.f32 0.0, %v497
    %v499 = vpop.f32.mrb[0].mxu0
    %500 = vmatprep.mubr.f32.mxu0 0.0
    %501 = vmatmul.mubr.f32.gmra.mrb[0].mxu0 %v388
    %v502 = vpop.f32.mrb[0].mxu0
    %v503 = vadd.f32 0.0, %v502
    %v504 = vpop.f32.mrb[0].mxu0
    %505 = vmatprep.mubr.f32.mxu0 0.0
    %506 = vmatmul.mubr.f32.gmra.mrb[0].mxu0 %v389
    %v507 = vpop.f32.mrb[0].mxu0
    %v508 = vadd.f32 0.0, %v507
    %v509 = vpop.f32.mrb[0].mxu0
    %510 = vmatprep.mubr.f32.mxu0 0.0
    %511 = vmatmul.mubr.f32.gmra.mrb[0].mxu0 %v390
    %v512 = vpop.f32.mrb[0].mxu0
    %v513 = vadd.f32 0.0, %v512
    %v514 = vpop.f32.mrb[0].mxu0
    %515 = vmatprep.mubr.f32.mxu0 0.0
    %516 = vmatmul.mubr.f32.gmra.mrb[0].mxu0 %v391
    %v517 = vpop.f32.mrb[0].mxu0
    %v518 = vadd.f32 0.0, %v517
    %v519 = vpop.f32.mrb[0].mxu0
    %520 = vmatprep.mubr.f32.mxu0 0.0
    %521 = vmatmul.mubr.f32.gmra.mrb[0].mxu0 %v392
    %v522 = vpop.f32.mrb[0].mxu0
    %v523 = vadd.f32 0.0, %v522
    %v524 = vpop.f32.mrb[0].mxu0
    %525 = vmatprep.mubr.f32.mxu0 0.0
    %526 = vmatmul.mubr.f32.gmra.mrb[0].mxu0 %v393
    %v527 = vpop.f32.mrb[0].mxu0
    %v528 = vadd.f32 0.0, %v527
    %v529 = vpop.f32.mrb[0].mxu0
    %530 = vmatprep.mubr.f32.mxu0 0.0
    %531 = vmatmul.mubr.f32.gmra.mrb[0].mxu0 %v394
    %v532 = vpop.f32.mrb[0].mxu0
    %v533 = vadd.f32 0.0, %v532
    %v534 = vpop.f32.mrb[0].mxu0
    %535 = vmatprep.mubr.f32.mxu0 0.0
    %536 = vmatmul.mubr.f32.gmra.mrb[0].mxu0 %v395
    %v537 = vpop.f32.mrb[0].mxu0
    %v538 = vadd.f32 0.0, %v537
    %v539 = vpop.f32.mrb[0].mxu0
    %540 = vdwg.mxu0
    %s541 = smul.u32 0, 128
    %v542 = vlaneseq
    %v543 = vand.u32 %v542, 127
    %v544 = vstv %s541
    %v545 = vadd.s32 %v544, %v543
    %vm546 = vcmp.lt.s32.totalorder %v545, 8
    %v547 = vsel %vm546, %v463, -inf
    %v548 = vsel %vm546, %v468, -inf
    %v549 = vsel %vm546, %v473, -inf
    %v550 = vsel %vm546, %v478, -inf
    %v551 = vsel %vm546, %v483, -inf
    %v552 = vsel %vm546, %v488, -inf
    %v553 = vsel %vm546, %v493, -inf
    %v554 = vsel %vm546, %v498, -inf
    %v555 = vsel %vm546, %v503, -inf
    %v556 = vsel %vm546, %v508, -inf
    %v557 = vsel %vm546, %v513, -inf
    %v558 = vsel %vm546, %v518, -inf
    %v559 = vsel %vm546, %v523, -inf
    %v560 = vsel %vm546, %v528, -inf
    %v561 = vsel %vm546, %v533, -inf
    %v562 = vsel %vm546, %v538, -inf
    %563 = vmax.xlane.f32.xlu0 %v547
    %v564 = vpop.xlane.xlu0 %563
    %565 = vmax.xlane.f32.xlu0 %v548
    %v566 = vpop.xlane.xlu0 %565
    %567 = vmax.xlane.f32.xlu0 %v549
    %v568 = vpop.xlane.xlu0 %567
    %569 = vmax.xlane.f32.xlu0 %v550
    %v570 = vpop.xlane.xlu0 %569
    %571 = vmax.xlane.f32.xlu0 %v551
    %v572 = vpop.xlane.xlu0 %571
    %573 = vmax.xlane.f32.xlu0 %v552
    %v574 = vpop.xlane.xlu0 %573
    %575 = vmax.xlane.f32.xlu0 %v553
    %v576 = vpop.xlane.xlu0 %575
    %577 = vmax.xlane.f32.xlu0 %v554
    %v578 = vpop.xlane.xlu0 %577
    %579 = vmax.xlane.f32.xlu0 %v555
    %v580 = vpop.xlane.xlu0 %579
    %581 = vmax.xlane.f32.xlu0 %v556
    %v582 = vpop.xlane.xlu0 %581
    %583 = vmax.xlane.f32.xlu0 %v557
    %v584 = vpop.xlane.xlu0 %583
    %585 = vmax.xlane.f32.xlu0 %v558
    %v586 = vpop.xlane.xlu0 %585
    %587 = vmax.xlane.f32.xlu0 %v559
    %v588 = vpop.xlane.xlu0 %587
    %589 = vmax.xlane.f32.xlu0 %v560
    %v590 = vpop.xlane.xlu0 %589
    %591 = vmax.xlane.f32.xlu0 %v561
    %v592 = vpop.xlane.xlu0 %591
    %593 = vmax.xlane.f32.xlu0 %v562
    %v594 = vpop.xlane.xlu0 %593
    %v595 = vld [vmem:[#allocation3] sm:$0xff]
    %v596 = vld [vmem:[#allocation3 + $0x8] sm:$0xff]
    %v597 = vld [vmem:[#allocation3 + $0x10] sm:$0xff]
    %v598 = vld [vmem:[#allocation3 + $0x18] sm:$0xff]
    %v599 = vld [vmem:[#allocation3 + $0x20] sm:$0xff]
    %v600 = vld [vmem:[#allocation3 + $0x28] sm:$0xff]
    %v601 = vld [vmem:[#allocation3 + $0x30] sm:$0xff]
    %v602 = vld [vmem:[#allocation3 + $0x38] sm:$0xff]
    %v603 = vld [vmem:[#allocation3 + $0x40] sm:$0xff]
    %v604 = vld [vmem:[#allocation3 + $0x48] sm:$0xff]
    %v605 = vld [vmem:[#allocation3 + $0x50] sm:$0xff]
    %v606 = vld [vmem:[#allocation3 + $0x58] sm:$0xff]
    %v607 = vld [vmem:[#allocation3 + $0x60] sm:$0xff]
    %v608 = vld [vmem:[#allocation3 + $0x68] sm:$0xff]
    %v609 = vld [vmem:[#allocation3 + $0x70] sm:$0xff]
    %v610 = vld [vmem:[#allocation3 + $0x78] sm:$0xff]
    %v611 = vmax.f32 %v595, %v564
    %v612 = vmax.f32 %v596, %v566
    %v613 = vmax.f32 %v597, %v568
    %v614 = vmax.f32 %v598, %v570
    %v615 = vmax.f32 %v599, %v572
    %v616 = vmax.f32 %v600, %v574
    %v617 = vmax.f32 %v601, %v576
    %v618 = vmax.f32 %v602, %v578
    %v619 = vmax.f32 %v603, %v580
    %v620 = vmax.f32 %v604, %v582
    %v621 = vmax.f32 %v605, %v584
    %v622 = vmax.f32 %v606, %v586
    %v623 = vmax.f32 %v607, %v588
    %v624 = vmax.f32 %v608, %v590
    %v625 = vmax.f32 %v609, %v592
    %v626 = vmax.f32 %v610, %v594
    %v627 = vsub.f32 %v595, %v611
    %v628 = vsub.f32 %v596, %v612
    %v629 = vsub.f32 %v597, %v613
    %v630 = vsub.f32 %v598, %v614
    %v631 = vsub.f32 %v599, %v615
    %v632 = vsub.f32 %v600, %v616
    %v633 = vsub.f32 %v601, %v617
    %v634 = vsub.f32 %v602, %v618
    %v635 = vsub.f32 %v603, %v619
    %v636 = vsub.f32 %v604, %v620
    %v637 = vsub.f32 %v605, %v621
    %v638 = vsub.f32 %v606, %v622
    %v639 = vsub.f32 %v607, %v623
    %v640 = vsub.f32 %v608, %v624
    %v641 = vsub.f32 %v609, %v625
    %v642 = vsub.f32 %v610, %v626
    %v643 = vmul.f32 %v627, 1.442695
    %v644 = vpow.pop %v643
    %v645 = vmul.f32 %v628, 1.442695
    %v646 = vpow.pop %v645
    %v647 = vmul.f32 %v629, 1.442695
    %v648 = vpow.pop %v647
    %v649 = vmul.f32 %v630, 1.442695
    %v650 = vpow.pop %v649
    %v651 = vmul.f32 %v631, 1.442695
    %v652 = vpow.pop %v651
    %v653 = vmul.f32 %v632, 1.442695
    %v654 = vpow.pop %v653
    %v655 = vmul.f32 %v633, 1.442695
    %v656 = vpow.pop %v655
    %v657 = vmul.f32 %v634, 1.442695
    %v658 = vpow.pop %v657
    %v659 = vmul.f32 %v635, 1.442695
    %v660 = vpow.pop %v659
    %v661 = vmul.f32 %v636, 1.442695
    %v662 = vpow.pop %v661
    %v663 = vmul.f32 %v637, 1.442695
    %v664 = vpow.pop %v663
    %v665 = vmul.f32 %v638, 1.442695
    %v666 = vpow.pop %v665
    %v667 = vmul.f32 %v639, 1.442695
    %v668 = vpow.pop %v667
    %v669 = vmul.f32 %v640, 1.442695
    %v670 = vpow.pop %v669
    %v671 = vmul.f32 %v641, 1.442695
    %v672 = vpow.pop %v671
    %v673 = vmul.f32 %v642, 1.442695
    %v674 = vpow.pop %v673
    %676 = vset.pattern.permute.xlu0 0
    %677 = vperm.xlu0 %676, %v611
    %v678 = vpop.permute.xlu0 %677
    %681 = vset.pattern.permute.xlu0 0
    %682 = vperm.xlu0 %681, %v612
    %v683 = vpop.permute.xlu0 %682
    %686 = vset.pattern.permute.xlu0 0
    %687 = vperm.xlu0 %686, %v613
    %v688 = vpop.permute.xlu0 %687
    %691 = vset.pattern.permute.xlu0 0
    %692 = vperm.xlu0 %691, %v614
    %v693 = vpop.permute.xlu0 %692
    %696 = vset.pattern.permute.xlu0 0
    %697 = vperm.xlu0 %696, %v615
    %v698 = vpop.permute.xlu0 %697
    %701 = vset.pattern.permute.xlu0 0
    %702 = vperm.xlu0 %701, %v616
    %v703 = vpop.permute.xlu0 %702
    %706 = vset.pattern.permute.xlu0 0
    %707 = vperm.xlu0 %706, %v617
    %v708 = vpop.permute.xlu0 %707
    %711 = vset.pattern.permute.xlu0 0
    %712 = vperm.xlu0 %711, %v618
    %v713 = vpop.permute.xlu0 %712
    %716 = vset.pattern.permute.xlu0 0
    %717 = vperm.xlu0 %716, %v619
    %v718 = vpop.permute.xlu0 %717
    %721 = vset.pattern.permute.xlu0 0
    %722 = vperm.xlu0 %721, %v620
    %v723 = vpop.permute.xlu0 %722
    %726 = vset.pattern.permute.xlu0 0
    %727 = vperm.xlu0 %726, %v621
    %v728 = vpop.permute.xlu0 %727
    %731 = vset.pattern.permute.xlu0 0
    %732 = vperm.xlu0 %731, %v622
    %v733 = vpop.permute.xlu0 %732
    %736 = vset.pattern.permute.xlu0 0
    %737 = vperm.xlu0 %736, %v623
    %v738 = vpop.permute.xlu0 %737
    %741 = vset.pattern.permute.xlu0 0
    %742 = vperm.xlu0 %741, %v624
    %v743 = vpop.permute.xlu0 %742
    %746 = vset.pattern.permute.xlu0 0
    %747 = vperm.xlu0 %746, %v625
    %v748 = vpop.permute.xlu0 %747
    %751 = vset.pattern.permute.xlu0 0
    %752 = vperm.xlu0 %751, %v626
    %v753 = vpop.permute.xlu0 %752
    %v755 = vsub.f32 %v547, %v678
    %v756 = vsub.f32 %v548, %v683
    %v757 = vsub.f32 %v549, %v688
    %v758 = vsub.f32 %v550, %v693
    %v759 = vsub.f32 %v551, %v698
    %v760 = vsub.f32 %v552, %v703
    %v761 = vsub.f32 %v553, %v708
    %v762 = vsub.f32 %v554, %v713
    %v763 = vsub.f32 %v555, %v718
    %v764 = vsub.f32 %v556, %v723
    %v765 = vsub.f32 %v557, %v728
    %v766 = vsub.f32 %v558, %v733
    %v767 = vsub.f32 %v559, %v738
    %v768 = vsub.f32 %v560, %v743
    %v769 = vsub.f32 %v561, %v748
    %v770 = vsub.f32 %v562, %v753
    %v771 = vmul.f32 %v755, 1.442695
    %v772 = vpow.pop %v771
    %v773 = vmul.f32 %v756, 1.442695
    %v774 = vpow.pop %v773
    %v775 = vmul.f32 %v757, 1.442695
    %v776 = vpow.pop %v775
    %v777 = vmul.f32 %v758, 1.442695
    %v778 = vpow.pop %v777
    %v779 = vmul.f32 %v759, 1.442695
    %v780 = vpow.pop %v779
    %v781 = vmul.f32 %v760, 1.442695
    %v782 = vpow.pop %v781
    %v783 = vmul.f32 %v761, 1.442695
    %v784 = vpow.pop %v783
    %v785 = vmul.f32 %v762, 1.442695
    %v786 = vpow.pop %v785
    %v787 = vmul.f32 %v763, 1.442695
    %v788 = vpow.pop %v787
    %v789 = vmul.f32 %v764, 1.442695
    %v790 = vpow.pop %v789
    %v791 = vmul.f32 %v765, 1.442695
    %v792 = vpow.pop %v791
    %v793 = vmul.f32 %v766, 1.442695
    %v794 = vpow.pop %v793
    %v795 = vmul.f32 %v767, 1.442695
    %v796 = vpow.pop %v795
    %v797 = vmul.f32 %v768, 1.442695
    %v798 = vpow.pop %v797
    %v799 = vmul.f32 %v769, 1.442695
    %v800 = vpow.pop %v799
    %v801 = vmul.f32 %v770, 1.442695
    %v802 = vpow.pop %v801
    %v803 = vld [vmem:[#allocation4] sm:$0xff]
    %v804 = vld [vmem:[#allocation4 + $0x8] sm:$0xff]
    %v805 = vld [vmem:[#allocation4 + $0x10] sm:$0xff]
    %v806 = vld [vmem:[#allocation4 + $0x18] sm:$0xff]
    %v807 = vld [vmem:[#allocation4 + $0x20] sm:$0xff]
    %v808 = vld [vmem:[#allocation4 + $0x28] sm:$0xff]
    %v809 = vld [vmem:[#allocation4 + $0x30] sm:$0xff]
    %v810 = vld [vmem:[#allocation4 + $0x38] sm:$0xff]
    %v811 = vld [vmem:[#allocation4 + $0x40] sm:$0xff]
    %v812 = vld [vmem:[#allocation4 + $0x48] sm:$0xff]
    %v813 = vld [vmem:[#allocation4 + $0x50] sm:$0xff]
    %v814 = vld [vmem:[#allocation4 + $0x58] sm:$0xff]
    %v815 = vld [vmem:[#allocation4 + $0x60] sm:$0xff]
    %v816 = vld [vmem:[#allocation4 + $0x68] sm:$0xff]
    %v817 = vld [vmem:[#allocation4 + $0x70] sm:$0xff]
    %v818 = vld [vmem:[#allocation4 + $0x78] sm:$0xff]
    %v819 = vmul.f32 %v803, %v644
    %v820 = vmul.f32 %v804, %v646
    %v821 = vmul.f32 %v805, %v648
    %v822 = vmul.f32 %v806, %v650
    %v823 = vmul.f32 %v807, %v652
    %v824 = vmul.f32 %v808, %v654
    %v825 = vmul.f32 %v809, %v656
    %v826 = vmul.f32 %v810, %v658
    %v827 = vmul.f32 %v811, %v660
    %v828 = vmul.f32 %v812, %v662
    %v829 = vmul.f32 %v813, %v664
    %v830 = vmul.f32 %v814, %v666
    %v831 = vmul.f32 %v815, %v668
    %v832 = vmul.f32 %v816, %v670
    %v833 = vmul.f32 %v817, %v672
    %v834 = vmul.f32 %v818, %v674
    %835 = vadd.xlane.f32.xlu0 %v772
    %v836 = vpop.xlane.xlu0 %835
    %837 = vadd.xlane.f32.xlu0 %v774
    %v838 = vpop.xlane.xlu0 %837
    %839 = vadd.xlane.f32.xlu0 %v776
    %v840 = vpop.xlane.xlu0 %839
    %841 = vadd.xlane.f32.xlu0 %v778
    %v842 = vpop.xlane.xlu0 %841
    %843 = vadd.xlane.f32.xlu0 %v780
    %v844 = vpop.xlane.xlu0 %843
    %845 = vadd.xlane.f32.xlu0 %v782
    %v846 = vpop.xlane.xlu0 %845
    %847 = vadd.xlane.f32.xlu0 %v784
    %v848 = vpop.xlane.xlu0 %847
    %849 = vadd.xlane.f32.xlu0 %v786
    %v850 = vpop.xlane.xlu0 %849
    %851 = vadd.xlane.f32.xlu0 %v788
    %v852 = vpop.xlane.xlu0 %851
    %853 = vadd.xlane.f32.xlu0 %v790
    %v854 = vpop.xlane.xlu0 %853
    %855 = vadd.xlane.f32.xlu0 %v792
    %v856 = vpop.xlane.xlu0 %855
    %857 = vadd.xlane.f32.xlu0 %v794
    %v858 = vpop.xlane.xlu0 %857
    %859 = vadd.xlane.f32.xlu0 %v796
    %v860 = vpop.xlane.xlu0 %859
    %861 = vadd.xlane.f32.xlu0 %v798
    %v862 = vpop.xlane.xlu0 %861
    %863 = vadd.xlane.f32.xlu0 %v800
    %v864 = vpop.xlane.xlu0 %863
    %865 = vadd.xlane.f32.xlu0 %v802
    %v866 = vpop.xlane.xlu0 %865
    %v867 = vadd.f32 %v819, %v836
    %v868 = vadd.f32 %v820, %v838
    %v869 = vadd.f32 %v821, %v840
    %v870 = vadd.f32 %v822, %v842
    %v871 = vadd.f32 %v823, %v844
    %v872 = vadd.f32 %v824, %v846
    %v873 = vadd.f32 %v825, %v848
    %v874 = vadd.f32 %v826, %v850
    %v875 = vadd.f32 %v827, %v852
    %v876 = vadd.f32 %v828, %v854
    %v877 = vadd.f32 %v829, %v856
    %v878 = vadd.f32 %v830, %v858
    %v879 = vadd.f32 %v831, %v860
    %v880 = vadd.f32 %v832, %v862
    %v881 = vadd.f32 %v833, %v864
    %v882 = vadd.f32 %v834, %v866
    %vm883 = vcmask 7168
    %884 = vst.msk [vmem:[#allocation4] sm:$0xff] %vm883, %v867
    %885 = vst.msk [vmem:[#allocation4 + $0x8] sm:$0xff] %vm883, %v868
    %886 = vst.msk [vmem:[#allocation4 + $0x10] sm:$0xff] %vm883, %v869
    %887 = vst.msk [vmem:[#allocation4 + $0x18] sm:$0xff] %vm883, %v870
    %888 = vst.msk [vmem:[#allocation4 + $0x20] sm:$0xff] %vm883, %v871
    %889 = vst.msk [vmem:[#allocation4 + $0x28] sm:$0xff] %vm883, %v872
    %890 = vst.msk [vmem:[#allocation4 + $0x30] sm:$0xff] %vm883, %v873
    %891 = vst.msk [vmem:[#allocation4 + $0x38] sm:$0xff] %vm883, %v874
    %892 = vst.msk [vmem:[#allocation4 + $0x40] sm:$0xff] %vm883, %v875
    %893 = vst.msk [vmem:[#allocation4 + $0x48] sm:$0xff] %vm883, %v876
    %894 = vst.msk [vmem:[#allocation4 + $0x50] sm:$0xff] %vm883, %v877
    %895 = vst.msk [vmem:[#allocation4 + $0x58] sm:$0xff] %vm883, %v878
    %896 = vst.msk [vmem:[#allocation4 + $0x60] sm:$0xff] %vm883, %v879
    %897 = vst.msk [vmem:[#allocation4 + $0x68] sm:$0xff] %vm883, %v880
    %898 = vst.msk [vmem:[#allocation4 + $0x70] sm:$0xff] %vm883, %v881
    %899 = vst.msk [vmem:[#allocation4 + $0x78] sm:$0xff] %vm883, %v882
    %vm900 = vcmp.ge.f32.partialorder %v547, %v564
    %vm901 = vcmp.ge.f32.partialorder %v548, %v566
    %vm902 = vcmp.ge.f32.partialorder %v549, %v568
    %vm903 = vcmp.ge.f32.partialorder %v550, %v570
    %vm904 = vcmp.ge.f32.partialorder %v551, %v572
    %vm905 = vcmp.ge.f32.partialorder %v552, %v574
    %vm906 = vcmp.ge.f32.partialorder %v553, %v576
    %vm907 = vcmp.ge.f32.partialorder %v554, %v578
    %vm908 = vcmp.ge.f32.partialorder %v555, %v580
    %vm909 = vcmp.ge.f32.partialorder %v556, %v582
    %vm910 = vcmp.ge.f32.partialorder %v557, %v584
    %vm911 = vcmp.ge.f32.partialorder %v558, %v586
    %vm912 = vcmp.ge.f32.partialorder %v559, %v588
    %vm913 = vcmp.ge.f32.partialorder %v560, %v590
    %vm914 = vcmp.ge.f32.partialorder %v561, %v592
    %vm915 = vcmp.ge.f32.partialorder %v562, %v594
    %v916 = vsel %vm900, %v545, 1073741824
    %v917 = vsel %vm901, %v545, 1073741824
    %v918 = vsel %vm902, %v545, 1073741824
    %v919 = vsel %vm903, %v545, 1073741824
    %v920 = vsel %vm904, %v545, 1073741824
    %v921 = vsel %vm905, %v545, 1073741824
    %v922 = vsel %vm906, %v545, 1073741824
    %v923 = vsel %vm907, %v545, 1073741824
    %v924 = vsel %vm908, %v545, 1073741824
    %v925 = vsel %vm909, %v545, 1073741824
    %v926 = vsel %vm910, %v545, 1073741824
    %v927 = vsel %vm911, %v545, 1073741824
    %v928 = vsel %vm912, %v545, 1073741824
    %v929 = vsel %vm913, %v545, 1073741824
    %v930 = vsel %vm914, %v545, 1073741824
    %v931 = vsel %vm915, %v545, 1073741824
    %v932 = vand.u32 %v916, 65535
    %v933 = vshra.s32 %v916, 16
    %v934 = vcvt.s32.f32 %v932
    %v935 = vcvt.s32.f32 %v933
    %936 = vmin.xlane.f32.xlu0 %v935
    %v937 = vpop.xlane.xlu0 %936
    %vm938 = vcmp.eq.f32.partialorder %v935, %v937
    %v939 = vsel %vm938, %v934, inf
    %940 = vmin.xlane.f32.xlu0 %v939
    %v941 = vpop.xlane.xlu0 %940
    %v942 = vcvt.f32.s32 %v941
    %v943 = vcvt.f32.s32 %v937
    %v944 = vshll.u32 %v943, 16
    %v945 = vadd.s32 %v944, %v942
    %v946 = vand.u32 %v917, 65535
    %v947 = vshra.s32 %v917, 16
    %v948 = vcvt.s32.f32 %v946
    %v949 = vcvt.s32.f32 %v947
    %950 = vmin.xlane.f32.xlu0 %v949
    %v951 = vpop.xlane.xlu0 %950
    %vm952 = vcmp.eq.f32.partialorder %v949, %v951
    %v953 = vsel %vm952, %v948, inf
    %954 = vmin.xlane.f32.xlu0 %v953
    %v955 = vpop.xlane.xlu0 %954
    %v956 = vcvt.f32.s32 %v955
    %v957 = vcvt.f32.s32 %v951
    %v958 = vshll.u32 %v957, 16
    %v959 = vadd.s32 %v958, %v956
    %v960 = vand.u32 %v918, 65535
    %v961 = vshra.s32 %v918, 16
    %v962 = vcvt.s32.f32 %v960
    %v963 = vcvt.s32.f32 %v961
    %964 = vmin.xlane.f32.xlu0 %v963
    %v965 = vpop.xlane.xlu0 %964
    %vm966 = vcmp.eq.f32.partialorder %v963, %v965
    %v967 = vsel %vm966, %v962, inf
    %968 = vmin.xlane.f32.xlu0 %v967
    %v969 = vpop.xlane.xlu0 %968
    %v970 = vcvt.f32.s32 %v969
    %v971 = vcvt.f32.s32 %v965
    %v972 = vshll.u32 %v971, 16
    %v973 = vadd.s32 %v972, %v970
    %v974 = vand.u32 %v919, 65535
    %v975 = vshra.s32 %v919, 16
    %v976 = vcvt.s32.f32 %v974
    %v977 = vcvt.s32.f32 %v975
    %978 = vmin.xlane.f32.xlu0 %v977
    %v979 = vpop.xlane.xlu0 %978
    %vm980 = vcmp.eq.f32.partialorder %v977, %v979
    %v981 = vsel %vm980, %v976, inf
    %982 = vmin.xlane.f32.xlu0 %v981
    %v983 = vpop.xlane.xlu0 %982
    %v984 = vcvt.f32.s32 %v983
    %v985 = vcvt.f32.s32 %v979
    %v986 = vshll.u32 %v985, 16
    %v987 = vadd.s32 %v986, %v984
    %v988 = vand.u32 %v920, 65535
    %v989 = vshra.s32 %v920, 16
    %v990 = vcvt.s32.f32 %v988
    %v991 = vcvt.s32.f32 %v989
    %992 = vmin.xlane.f32.xlu0 %v991
    %v993 = vpop.xlane.xlu0 %992
    %vm994 = vcmp.eq.f32.partialorder %v991, %v993
    %v995 = vsel %vm994, %v990, inf
    %996 = vmin.xlane.f32.xlu0 %v995
    %v997 = vpop.xlane.xlu0 %996
    %v998 = vcvt.f32.s32 %v997
    %v999 = vcvt.f32.s32 %v993
    %v1000 = vshll.u32 %v999, 16
    %v1001 = vadd.s32 %v1000, %v998
    %v1002 = vand.u32 %v921, 65535
    %v1003 = vshra.s32 %v921, 16
    %v1004 = vcvt.s32.f32 %v1002
    %v1005 = vcvt.s32.f32 %v1003
    %1006 = vmin.xlane.f32.xlu0 %v1005
    %v1007 = vpop.xlane.xlu0 %1006
    %vm1008 = vcmp.eq.f32.partialorder %v1005, %v1007
    %v1009 = vsel %vm1008, %v1004, inf
    %1010 = vmin.xlane.f32.xlu0 %v1009
    %v1011 = vpop.xlane.xlu0 %1010
    %v1012 = vcvt.f32.s32 %v1011
    %v1013 = vcvt.f32.s32 %v1007
    %v1014 = vshll.u32 %v1013, 16
    %v1015 = vadd.s32 %v1014, %v1012
    %v1016 = vand.u32 %v922, 65535
    %v1017 = vshra.s32 %v922, 16
    %v1018 = vcvt.s32.f32 %v1016
    %v1019 = vcvt.s32.f32 %v1017
    %1020 = vmin.xlane.f32.xlu0 %v1019
    %v1021 = vpop.xlane.xlu0 %1020
    %vm1022 = vcmp.eq.f32.partialorder %v1019, %v1021
    %v1023 = vsel %vm1022, %v1018, inf
    %1024 = vmin.xlane.f32.xlu0 %v1023
    %v1025 = vpop.xlane.xlu0 %1024
    %v1026 = vcvt.f32.s32 %v1025
    %v1027 = vcvt.f32.s32 %v1021
    %v1028 = vshll.u32 %v1027, 16
    %v1029 = vadd.s32 %v1028, %v1026
    %v1030 = vand.u32 %v923, 65535
    %v1031 = vshra.s32 %v923, 16
    %v1032 = vcvt.s32.f32 %v1030
    %v1033 = vcvt.s32.f32 %v1031
    %1034 = vmin.xlane.f32.xlu0 %v1033
    %v1035 = vpop.xlane.xlu0 %1034
    %vm1036 = vcmp.eq.f32.partialorder %v1033, %v1035
    %v1037 = vsel %vm1036, %v1032, inf
    %1038 = vmin.xlane.f32.xlu0 %v1037
    %v1039 = vpop.xlane.xlu0 %1038
    %v1040 = vcvt.f32.s32 %v1039
    %v1041 = vcvt.f32.s32 %v1035
    %v1042 = vshll.u32 %v1041, 16
    %v1043 = vadd.s32 %v1042, %v1040
    %v1044 = vand.u32 %v924, 65535
    %v1045 = vshra.s32 %v924, 16
    %v1046 = vcvt.s32.f32 %v1044
    %v1047 = vcvt.s32.f32 %v1045
    %1048 = vmin.xlane.f32.xlu0 %v1047
    %v1049 = vpop.xlane.xlu0 %1048
    %vm1050 = vcmp.eq.f32.partialorder %v1047, %v1049
    %v1051 = vsel %vm1050, %v1046, inf
    %1052 = vmin.xlane.f32.xlu0 %v1051
    %v1053 = vpop.xlane.xlu0 %1052
    %v1054 = vcvt.f32.s32 %v1053
    %v1055 = vcvt.f32.s32 %v1049
    %v1056 = vshll.u32 %v1055, 16
    %v1057 = vadd.s32 %v1056, %v1054
    %v1058 = vand.u32 %v925, 65535
    %v1059 = vshra.s32 %v925, 16
    %v1060 = vcvt.s32.f32 %v1058
    %v1061 = vcvt.s32.f32 %v1059
    %1062 = vmin.xlane.f32.xlu0 %v1061
    %v1063 = vpop.xlane.xlu0 %1062
    %vm1064 = vcmp.eq.f32.partialorder %v1061, %v1063
    %v1065 = vsel %vm1064, %v1060, inf
    %1066 = vmin.xlane.f32.xlu0 %v1065
    %v1067 = vpop.xlane.xlu0 %1066
    %v1068 = vcvt.f32.s32 %v1067
    %v1069 = vcvt.f32.s32 %v1063
    %v1070 = vshll.u32 %v1069, 16
    %v1071 = vadd.s32 %v1070, %v1068
    %v1072 = vand.u32 %v926, 65535
    %v1073 = vshra.s32 %v926, 16
    %v1074 = vcvt.s32.f32 %v1072
    %v1075 = vcvt.s32.f32 %v1073
    %1076 = vmin.xlane.f32.xlu0 %v1075
    %v1077 = vpop.xlane.xlu0 %1076
    %vm1078 = vcmp.eq.f32.partialorder %v1075, %v1077
    %v1079 = vsel %vm1078, %v1074, inf
    %1080 = vmin.xlane.f32.xlu0 %v1079
    %v1081 = vpop.xlane.xlu0 %1080
    %v1082 = vcvt.f32.s32 %v1081
    %v1083 = vcvt.f32.s32 %v1077
    %v1084 = vshll.u32 %v1083, 16
    %v1085 = vadd.s32 %v1084, %v1082
    %v1086 = vand.u32 %v927, 65535
    %v1087 = vshra.s32 %v927, 16
    %v1088 = vcvt.s32.f32 %v1086
    %v1089 = vcvt.s32.f32 %v1087
    %1090 = vmin.xlane.f32.xlu0 %v1089
    %v1091 = vpop.xlane.xlu0 %1090
    %vm1092 = vcmp.eq.f32.partialorder %v1089, %v1091
    %v1093 = vsel %vm1092, %v1088, inf
    %1094 = vmin.xlane.f32.xlu0 %v1093
    %v1095 = vpop.xlane.xlu0 %1094
    %v1096 = vcvt.f32.s32 %v1095
    %v1097 = vcvt.f32.s32 %v1091
    %v1098 = vshll.u32 %v1097, 16
    %v1099 = vadd.s32 %v1098, %v1096
    %v1100 = vand.u32 %v928, 65535
    %v1101 = vshra.s32 %v928, 16
    %v1102 = vcvt.s32.f32 %v1100
    %v1103 = vcvt.s32.f32 %v1101
    %1104 = vmin.xlane.f32.xlu0 %v1103
    %v1105 = vpop.xlane.xlu0 %1104
    %vm1106 = vcmp.eq.f32.partialorder %v1103, %v1105
    %v1107 = vsel %vm1106, %v1102, inf
    %1108 = vmin.xlane.f32.xlu0 %v1107
    %v1109 = vpop.xlane.xlu0 %1108
    %v1110 = vcvt.f32.s32 %v1109
    %v1111 = vcvt.f32.s32 %v1105
    %v1112 = vshll.u32 %v1111, 16
    %v1113 = vadd.s32 %v1112, %v1110
    %v1114 = vand.u32 %v929, 65535
    %v1115 = vshra.s32 %v929, 16
    %v1116 = vcvt.s32.f32 %v1114
    %v1117 = vcvt.s32.f32 %v1115
    %1118 = vmin.xlane.f32.xlu0 %v1117
    %v1119 = vpop.xlane.xlu0 %1118
    %vm1120 = vcmp.eq.f32.partialorder %v1117, %v1119
    %v1121 = vsel %vm1120, %v1116, inf
    %1122 = vmin.xlane.f32.xlu0 %v1121
    %v1123 = vpop.xlane.xlu0 %1122
    %v1124 = vcvt.f32.s32 %v1123
    %v1125 = vcvt.f32.s32 %v1119
    %v1126 = vshll.u32 %v1125, 16
    %v1127 = vadd.s32 %v1126, %v1124
    %v1128 = vand.u32 %v930, 65535
    %v1129 = vshra.s32 %v930, 16
    %v1130 = vcvt.s32.f32 %v1128
    %v1131 = vcvt.s32.f32 %v1129
    %1132 = vmin.xlane.f32.xlu0 %v1131
    %v1133 = vpop.xlane.xlu0 %1132
    %vm1134 = vcmp.eq.f32.partialorder %v1131, %v1133
    %v1135 = vsel %vm1134, %v1130, inf
    %1136 = vmin.xlane.f32.xlu0 %v1135
    %v1137 = vpop.xlane.xlu0 %1136
    %v1138 = vcvt.f32.s32 %v1137
    %v1139 = vcvt.f32.s32 %v1133
    %v1140 = vshll.u32 %v1139, 16
    %v1141 = vadd.s32 %v1140, %v1138
    %v1142 = vand.u32 %v931, 65535
    %v1143 = vshra.s32 %v931, 16
    %v1144 = vcvt.s32.f32 %v1142
    %v1145 = vcvt.s32.f32 %v1143
    %1146 = vmin.xlane.f32.xlu0 %v1145
    %v1147 = vpop.xlane.xlu0 %1146
    %vm1148 = vcmp.eq.f32.partialorder %v1145, %v1147
    %v1149 = vsel %vm1148, %v1144, inf
    %1150 = vmin.xlane.f32.xlu0 %v1149
    %v1151 = vpop.xlane.xlu0 %1150
    %v1152 = vcvt.f32.s32 %v1151
    %v1153 = vcvt.f32.s32 %v1147
    %v1154 = vshll.u32 %v1153, 16
    %v1155 = vadd.s32 %v1154, %v1152
    %vm1156 = vcmp.gt.f32.partialorder %v564, %v595
    %vm1157 = vcmp.gt.f32.partialorder %v566, %v596
    %vm1158 = vcmp.gt.f32.partialorder %v568, %v597
    %vm1159 = vcmp.gt.f32.partialorder %v570, %v598
    %vm1160 = vcmp.gt.f32.partialorder %v572, %v599
    %vm1161 = vcmp.gt.f32.partialorder %v574, %v600
    %vm1162 = vcmp.gt.f32.partialorder %v576, %v601
    %vm1163 = vcmp.gt.f32.partialorder %v578, %v602
    %vm1164 = vcmp.gt.f32.partialorder %v580, %v603
    %vm1165 = vcmp.gt.f32.partialorder %v582, %v604
    %vm1166 = vcmp.gt.f32.partialorder %v584, %v605
    %vm1167 = vcmp.gt.f32.partialorder %v586, %v606
    %vm1168 = vcmp.gt.f32.partialorder %v588, %v607
    %vm1169 = vcmp.gt.f32.partialorder %v590, %v608
    %vm1170 = vcmp.gt.f32.partialorder %v592, %v609
    %vm1171 = vcmp.gt.f32.partialorder %v594, %v610
    %v1172 = vld [vmem:[#allocation6] sm:$0xff]
    %v1173 = vld [vmem:[#allocation6 + $0x8] sm:$0xff]
    %v1174 = vld [vmem:[#allocation6 + $0x10] sm:$0xff]
    %v1175 = vld [vmem:[#allocation6 + $0x18] sm:$0xff]
    %v1176 = vld [vmem:[#allocation6 + $0x20] sm:$0xff]
    %v1177 = vld [vmem:[#allocation6 + $0x28] sm:$0xff]
    %v1178 = vld [vmem:[#allocation6 + $0x30] sm:$0xff]
    %v1179 = vld [vmem:[#allocation6 + $0x38] sm:$0xff]
    %v1180 = vld [vmem:[#allocation6 + $0x40] sm:$0xff]
    %v1181 = vld [vmem:[#allocation6 + $0x48] sm:$0xff]
    %v1182 = vld [vmem:[#allocation6 + $0x50] sm:$0xff]
    %v1183 = vld [vmem:[#allocation6 + $0x58] sm:$0xff]
    %v1184 = vld [vmem:[#allocation6 + $0x60] sm:$0xff]
    %v1185 = vld [vmem:[#allocation6 + $0x68] sm:$0xff]
    %v1186 = vld [vmem:[#allocation6 + $0x70] sm:$0xff]
    %v1187 = vld [vmem:[#allocation6 + $0x78] sm:$0xff]
    %v1188 = vsel %vm1156, %v945, %v1172
    %v1189 = vsel %vm1157, %v959, %v1173
    %v1190 = vsel %vm1158, %v973, %v1174
    %v1191 = vsel %vm1159, %v987, %v1175
    %v1192 = vsel %vm1160, %v1001, %v1176
    %v1193 = vsel %vm1161, %v1015, %v1177
    %v1194 = vsel %vm1162, %v1029, %v1178
    %v1195 = vsel %vm1163, %v1043, %v1179
    %v1196 = vsel %vm1164, %v1057, %v1180
    %v1197 = vsel %vm1165, %v1071, %v1181
    %v1198 = vsel %vm1166, %v1085, %v1182
    %v1199 = vsel %vm1167, %v1099, %v1183
    %v1200 = vsel %vm1168, %v1113, %v1184
    %v1201 = vsel %vm1169, %v1127, %v1185
    %v1202 = vsel %vm1170, %v1141, %v1186
    %v1203 = vsel %vm1171, %v1155, %v1187
    %1204 = vst.msk [vmem:[#allocation6] sm:$0xff] %vm883, %v1188
    %1205 = vst.msk [vmem:[#allocation6 + $0x8] sm:$0xff] %vm883, %v1189
    %1206 = vst.msk [vmem:[#allocation6 + $0x10] sm:$0xff] %vm883, %v1190
    %1207 = vst.msk [vmem:[#allocation6 + $0x18] sm:$0xff] %vm883, %v1191
    %1208 = vst.msk [vmem:[#allocation6 + $0x20] sm:$0xff] %vm883, %v1192
    %1209 = vst.msk [vmem:[#allocation6 + $0x28] sm:$0xff] %vm883, %v1193
    %1210 = vst.msk [vmem:[#allocation6 + $0x30] sm:$0xff] %vm883, %v1194
    %1211 = vst.msk [vmem:[#allocation6 + $0x38] sm:$0xff] %vm883, %v1195
    %1212 = vst.msk [vmem:[#allocation6 + $0x40] sm:$0xff] %vm883, %v1196
    %1213 = vst.msk [vmem:[#allocation6 + $0x48] sm:$0xff] %vm883, %v1197
    %1214 = vst.msk [vmem:[#allocation6 + $0x50] sm:$0xff] %vm883, %v1198
    %1215 = vst.msk [vmem:[#allocation6 + $0x58] sm:$0xff] %vm883, %v1199
    %1216 = vst.msk [vmem:[#allocation6 + $0x60] sm:$0xff] %vm883, %v1200
    %1217 = vst.msk [vmem:[#allocation6 + $0x68] sm:$0xff] %vm883, %v1201
    %1218 = vst.msk [vmem:[#allocation6 + $0x70] sm:$0xff] %vm883, %v1202
    %1219 = vst.msk [vmem:[#allocation6 + $0x78] sm:$0xff] %vm883, %v1203
    %1220 = vst.msk [vmem:[#allocation3] sm:$0xff] %vm883, %v611
    %1221 = vst.msk [vmem:[#allocation3 + $0x8] sm:$0xff] %vm883, %v612
    %1222 = vst.msk [vmem:[#allocation3 + $0x10] sm:$0xff] %vm883, %v613
    %1223 = vst.msk [vmem:[#allocation3 + $0x18] sm:$0xff] %vm883, %v614
    %1224 = vst.msk [vmem:[#allocation3 + $0x20] sm:$0xff] %vm883, %v615
    %1225 = vst.msk [vmem:[#allocation3 + $0x28] sm:$0xff] %vm883, %v616
    %1226 = vst.msk [vmem:[#allocation3 + $0x30] sm:$0xff] %vm883, %v617
    %1227 = vst.msk [vmem:[#allocation3 + $0x38] sm:$0xff] %vm883, %v618
    %1228 = vst.msk [vmem:[#allocation3 + $0x40] sm:$0xff] %vm883, %v619
    %1229 = vst.msk [vmem:[#allocation3 + $0x48] sm:$0xff] %vm883, %v620
    %1230 = vst.msk [vmem:[#allocation3 + $0x50] sm:$0xff] %vm883, %v621
    %1231 = vst.msk [vmem:[#allocation3 + $0x58] sm:$0xff] %vm883, %v622
    %1232 = vst.msk [vmem:[#allocation3 + $0x60] sm:$0xff] %vm883, %v623
    %1233 = vst.msk [vmem:[#allocation3 + $0x68] sm:$0xff] %vm883, %v624
    %1234 = vst.msk [vmem:[#allocation3 + $0x70] sm:$0xff] %vm883, %v625
    %1235 = vst.msk [vmem:[#allocation3 + $0x78] sm:$0xff] %vm883, %v626
    %v1236 = vld [vmem:[#allocation5] sm:$0xff]
    %v1237 = vld [vmem:[#allocation5 + $0x8] sm:$0xff]
    %v1238 = vld [vmem:[#allocation5 + $0x10] sm:$0xff]
    %v1239 = vld [vmem:[#allocation5 + $0x18] sm:$0xff]
    %v1240 = vld [vmem:[#allocation5 + $0x20] sm:$0xff]
    %v1241 = vld [vmem:[#allocation5 + $0x28] sm:$0xff]
    %v1242 = vld [vmem:[#allocation5 + $0x30] sm:$0xff]
    %v1243 = vld [vmem:[#allocation5 + $0x38] sm:$0xff]
    %v1244 = vld [vmem:[#allocation5 + $0x40] sm:$0xff]
    %v1245 = vld [vmem:[#allocation5 + $0x48] sm:$0xff]
    %v1246 = vld [vmem:[#allocation5 + $0x50] sm:$0xff]
    %v1247 = vld [vmem:[#allocation5 + $0x58] sm:$0xff]
    %v1248 = vld [vmem:[#allocation5 + $0x60] sm:$0xff]
    %v1249 = vld [vmem:[#allocation5 + $0x68] sm:$0xff]
    %v1250 = vld [vmem:[#allocation5 + $0x70] sm:$0xff]
    %v1251 = vld [vmem:[#allocation5 + $0x78] sm:$0xff]
    %v1252 = vsel %vm546, %v463, 0.0
    %v1253 = vsel %vm546, %v468, 0.0
    %v1254 = vsel %vm546, %v473, 0.0
    %v1255 = vsel %vm546, %v478, 0.0
    %v1256 = vsel %vm546, %v483, 0.0
    %v1257 = vsel %vm546, %v488, 0.0
    %v1258 = vsel %vm546, %v493, 0.0
    %v1259 = vsel %vm546, %v498, 0.0
    %v1260 = vsel %vm546, %v503, 0.0
    %v1261 = vsel %vm546, %v508, 0.0
    %v1262 = vsel %vm546, %v513, 0.0
    %v1263 = vsel %vm546, %v518, 0.0
    %v1264 = vsel %vm546, %v523, 0.0
    %v1265 = vsel %vm546, %v528, 0.0
    %v1266 = vsel %vm546, %v533, 0.0
    %v1267 = vsel %vm546, %v538, 0.0
    %1268 = vadd.xlane.f32.xlu0 %v1252
    %v1269 = vpop.xlane.xlu0 %1268
    %1270 = vadd.xlane.f32.xlu0 %v1253
    %v1271 = vpop.xlane.xlu0 %1270
    %1272 = vadd.xlane.f32.xlu0 %v1254
    %v1273 = vpop.xlane.xlu0 %1272
    %1274 = vadd.xlane.f32.xlu0 %v1255
    %v1275 = vpop.xlane.xlu0 %1274
    %1276 = vadd.xlane.f32.xlu0 %v1256
    %v1277 = vpop.xlane.xlu0 %1276
    %1278 = vadd.xlane.f32.xlu0 %v1257
    %v1279 = vpop.xlane.xlu0 %1278
    %1280 = vadd.xlane.f32.xlu0 %v1258
    %v1281 = vpop.xlane.xlu0 %1280
    %1282 = vadd.xlane.f32.xlu0 %v1259
    %v1283 = vpop.xlane.xlu0 %1282
    %1284 = vadd.xlane.f32.xlu0 %v1260
    %v1285 = vpop.xlane.xlu0 %1284
    %1286 = vadd.xlane.f32.xlu0 %v1261
    %v1287 = vpop.xlane.xlu0 %1286
    %1288 = vadd.xlane.f32.xlu0 %v1262
    %v1289 = vpop.xlane.xlu0 %1288
    %1290 = vadd.xlane.f32.xlu0 %v1263
    %v1291 = vpop.xlane.xlu0 %1290
    %1292 = vadd.xlane.f32.xlu0 %v1264
    %v1293 = vpop.xlane.xlu0 %1292
    %1294 = vadd.xlane.f32.xlu0 %v1265
    %v1295 = vpop.xlane.xlu0 %1294
    %1296 = vadd.xlane.f32.xlu0 %v1266
    %v1297 = vpop.xlane.xlu0 %1296
    %1298 = vadd.xlane.f32.xlu0 %v1267
    %v1299 = vpop.xlane.xlu0 %1298
    %v1300 = vadd.f32 %v1236, %v1269
    %v1301 = vadd.f32 %v1237, %v1271
    %v1302 = vadd.f32 %v1238, %v1273
    %v1303 = vadd.f32 %v1239, %v1275
    %v1304 = vadd.f32 %v1240, %v1277
    %v1305 = vadd.f32 %v1241, %v1279
    %v1306 = vadd.f32 %v1242, %v1281
    %v1307 = vadd.f32 %v1243, %v1283
    %v1308 = vadd.f32 %v1244, %v1285
    %v1309 = vadd.f32 %v1245, %v1287
    %v1310 = vadd.f32 %v1246, %v1289
    %v1311 = vadd.f32 %v1247, %v1291
    %v1312 = vadd.f32 %v1248, %v1293
    %v1313 = vadd.f32 %v1249, %v1295
    %v1314 = vadd.f32 %v1250, %v1297
    %v1315 = vadd.f32 %v1251, %v1299
    %1316 = vst.msk [vmem:[#allocation5] sm:$0xff] %vm883, %v1300
    %1317 = vst.msk [vmem:[#allocation5 + $0x8] sm:$0xff] %vm883, %v1301
    %1318 = vst.msk [vmem:[#allocation5 + $0x10] sm:$0xff] %vm883, %v1302
    %1319 = vst.msk [vmem:[#allocation5 + $0x18] sm:$0xff] %vm883, %v1303
    %1320 = vst.msk [vmem:[#allocation5 + $0x20] sm:$0xff] %vm883, %v1304
    %1321 = vst.msk [vmem:[#allocation5 + $0x28] sm:$0xff] %vm883, %v1305
    %1322 = vst.msk [vmem:[#allocation5 + $0x30] sm:$0xff] %vm883, %v1306
    %1323 = vst.msk [vmem:[#allocation5 + $0x38] sm:$0xff] %vm883, %v1307
    %1324 = vst.msk [vmem:[#allocation5 + $0x40] sm:$0xff] %vm883, %v1308
    %1325 = vst.msk [vmem:[#allocation5 + $0x48] sm:$0xff] %vm883, %v1309
    %1326 = vst.msk [vmem:[#allocation5 + $0x50] sm:$0xff] %vm883, %v1310
    %1327 = vst.msk [vmem:[#allocation5 + $0x58] sm:$0xff] %vm883, %v1311
    %1328 = vst.msk [vmem:[#allocation5 + $0x60] sm:$0xff] %vm883, %v1312
    %1329 = vst.msk [vmem:[#allocation5 + $0x68] sm:$0xff] %vm883, %v1313
    %1330 = vst.msk [vmem:[#allocation5 + $0x70] sm:$0xff] %vm883, %v1314
    %1331 = vst.msk [vmem:[#allocation5 + $0x78] sm:$0xff] %vm883, %v1315
    %p1332 = scmp.eq.s32.totalorder 0, 0
    // Predicated region
    $region22: #{tpu_custom_call.1} parent=1 // pred_check
      %p1333 = pneg %p1332
    $region23: #{tpu_custom_call.1} parent=1 // pred_check_branch
      %1335 = sbr.rel (%p1333) target = $region25
    $region24: #{tpu_custom_call.1} parent=1 // pred_region
      %v1336 = vmul.f32 %v380, %v364
      %v1337 = vmul.f32 %v381, %v365
      %v1338 = vmul.f32 %v382, %v366
      %v1339 = vmul.f32 %v383, %v367
      %v1340 = vmul.f32 %v384, %v368
      %v1341 = vmul.f32 %v385, %v369
      %v1342 = vmul.f32 %v386, %v370
      %v1343 = vmul.f32 %v387, %v371
      %v1344 = vmul.f32 %v388, %v372
      %v1345 = vmul.f32 %v389, %v373
      %v1346 = vmul.f32 %v390, %v374
      %v1347 = vmul.f32 %v391, %v375
      %v1348 = vmul.f32 %v392, %v376
      %v1349 = vmul.f32 %v393, %v377
      %v1350 = vmul.f32 %v394, %v378
      %v1351 = vmul.f32 %v395, %v379
      %1352 = vadd.xlane.f32.xlu0 %v1336
      %v1353 = vpop.xlane.xlu0 %1352
      %1354 = vadd.xlane.f32.xlu0 %v1337
      %v1355 = vpop.xlane.xlu0 %1354
      %1356 = vadd.xlane.f32.xlu0 %v1338
      %v1357 = vpop.xlane.xlu0 %1356
      %1358 = vadd.xlane.f32.xlu0 %v1339
      %v1359 = vpop.xlane.xlu0 %1358
      %1360 = vadd.xlane.f32.xlu0 %v1340
      %v1361 = vpop.xlane.xlu0 %1360
      %1362 = vadd.xlane.f32.xlu0 %v1341
      %v1363 = vpop.xlane.xlu0 %1362
      %1364 = vadd.xlane.f32.xlu0 %v1342
      %v1365 = vpop.xlane.xlu0 %1364
      %1366 = vadd.xlane.f32.xlu0 %v1343
      %v1367 = vpop.xlane.xlu0 %1366
      %1368 = vadd.xlane.f32.xlu0 %v1344
      %v1369 = vpop.xlane.xlu0 %1368
      %1370 = vadd.xlane.f32.xlu0 %v1345
      %v1371 = vpop.xlane.xlu0 %1370
      %1372 = vadd.xlane.f32.xlu0 %v1346
      %v1373 = vpop.xlane.xlu0 %1372
      %1374 = vadd.xlane.f32.xlu0 %v1347
      %v1375 = vpop.xlane.xlu0 %1374
      %1376 = vadd.xlane.f32.xlu0 %v1348
      %v1377 = vpop.xlane.xlu0 %1376
      %1378 = vadd.xlane.f32.xlu0 %v1349
      %v1379 = vpop.xlane.xlu0 %1378
      %1380 = vadd.xlane.f32.xlu0 %v1350
      %v1381 = vpop.xlane.xlu0 %1380
      %1382 = vadd.xlane.f32.xlu0 %v1351
      %v1383 = vpop.xlane.xlu0 %1382
      %1384 = vst.msk [vmem:[#allocation7] sm:$0xff] %vm883, %v1353
      %1385 = vst.msk [vmem:[#allocation7 + $0x8] sm:$0xff] %vm883, %v1355
      %1386 = vst.msk [vmem:[#allocation7 + $0x10] sm:$0xff] %vm883, %v1357
      %1387 = vst.msk [vmem:[#allocation7 + $0x18] sm:$0xff] %vm883, %v1359
      %1388 = vst.msk [vmem:[#allocation7 + $0x20] sm:$0xff] %vm883, %v1361
      %1389 = vst.msk [vmem:[#allocation7 + $0x28] sm:$0xff] %vm883, %v1363
      %1390 = vst.msk [vmem:[#allocation7 + $0x30] sm:$0xff] %vm883, %v1365
      %1391 = vst.msk [vmem:[#allocation7 + $0x38] sm:$0xff] %vm883, %v1367
      %1392 = vst.msk [vmem:[#allocation7 + $0x40] sm:$0xff] %vm883, %v1369
      %1393 = vst.msk [vmem:[#allocation7 + $0x48] sm:$0xff] %vm883, %v1371
      %1394 = vst.msk [vmem:[#allocation7 + $0x50] sm:$0xff] %vm883, %v1373
      %1395 = vst.msk [vmem:[#allocation7 + $0x58] sm:$0xff] %vm883, %v1375
      %1396 = vst.msk [vmem:[#allocation7 + $0x60] sm:$0xff] %vm883, %v1377
      %1397 = vst.msk [vmem:[#allocation7 + $0x68] sm:$0xff] %vm883, %v1379
      %1398 = vst.msk [vmem:[#allocation7 + $0x70] sm:$0xff] %vm883, %v1381
      %1399 = vst.msk [vmem:[#allocation7 + $0x78] sm:$0xff] %vm883, %v1383
    $region25: #{tpu_custom_call.1} parent=1 // pred_fallthru
      _
    // Predicated region
    $region26: #{tpu_custom_call.1} parent=1 // pred_check
      %p1400 = pneg %p39
    $region27: #{tpu_custom_call.1} parent=1 // pred_check_branch
      %1402 = sbr.rel (%p1400) target = $region29
    $region28: #{tpu_custom_call.1} parent=1 // pred_region
      %s1403 = smul.u32 0, 128
      %v1404 = vlaneseq
      %v1405 = vshrl.u32 %v1404, 7
      %v1406 = vadd.s32 %v1405, 8
      %v1407 = vadd.s32 %v1405, 16
      %v1408 = vadd.s32 %v1405, 24
      %v1409 = vadd.s32 %v1405, 32
      %v1410 = vadd.s32 %v1405, 40
      %v1411 = vadd.s32 %v1405, 48
      %v1412 = vadd.s32 %v1405, 56
      %v1413 = vadd.s32 %v1405, 64
      %v1414 = vadd.s32 %v1405, 72
      %v1415 = vadd.s32 %v1405, 80
      %v1416 = vadd.s32 %v1405, 88
      %v1417 = vadd.s32 %v1405, 96
      %v1418 = vadd.s32 %v1405, 104
      %v1419 = vadd.s32 %v1405, 112
      %v1420 = vadd.s32 %v1405, 120
      %v1421 = vstv %s1403
      %v1422 = vadd.s32 %v1421, %v1405
      %v1423 = vadd.s32 %v1421, %v1406
      %v1424 = vadd.s32 %v1421, %v1407
      %v1425 = vadd.s32 %v1421, %v1408
      %v1426 = vadd.s32 %v1421, %v1409
      %v1427 = vadd.s32 %v1421, %v1410
      %v1428 = vadd.s32 %v1421, %v1411
      %v1429 = vadd.s32 %v1421, %v1412
      %v1430 = vadd.s32 %v1421, %v1413
      %v1431 = vadd.s32 %v1421, %v1414
      %v1432 = vadd.s32 %v1421, %v1415
      %v1433 = vadd.s32 %v1421, %v1416
      %v1434 = vadd.s32 %v1421, %v1417
      %v1435 = vadd.s32 %v1421, %v1418
      %v1436 = vadd.s32 %v1421, %v1419
      %v1437 = vadd.s32 %v1421, %v1420
      %vm1438 = vcmp.lt.s32.totalorder %v1422, 8
      %vm1439 = vcmp.lt.s32.totalorder %v1423, 8
      %vm1440 = vcmp.lt.s32.totalorder %v1424, 8
      %vm1441 = vcmp.lt.s32.totalorder %v1425, 8
      %vm1442 = vcmp.lt.s32.totalorder %v1426, 8
      %vm1443 = vcmp.lt.s32.totalorder %v1427, 8
      %vm1444 = vcmp.lt.s32.totalorder %v1428, 8
      %vm1445 = vcmp.lt.s32.totalorder %v1429, 8
      %vm1446 = vcmp.lt.s32.totalorder %v1430, 8
      %vm1447 = vcmp.lt.s32.totalorder %v1431, 8
      %vm1448 = vcmp.lt.s32.totalorder %v1432, 8
      %vm1449 = vcmp.lt.s32.totalorder %v1433, 8
      %vm1450 = vcmp.lt.s32.totalorder %v1434, 8
      %vm1451 = vcmp.lt.s32.totalorder %v1435, 8
      %vm1452 = vcmp.lt.s32.totalorder %v1436, 8
      %vm1453 = vcmp.lt.s32.totalorder %v1437, 8
      %v1454 = vld [vmem:[#allocation3] sm:$0xff]
      %v1455 = vld [vmem:[#allocation3 + $0x8] sm:$0xff]
      %v1456 = vld [vmem:[#allocation3 + $0x10] sm:$0xff]
      %v1457 = vld [vmem:[#allocation3 + $0x18] sm:$0xff]
      %v1458 = vld [vmem:[#allocation3 + $0x20] sm:$0xff]
      %v1459 = vld [vmem:[#allocation3 + $0x28] sm:$0xff]
      %v1460 = vld [vmem:[#allocation3 + $0x30] sm:$0xff]
      %v1461 = vld [vmem:[#allocation3 + $0x38] sm:$0xff]
      %v1462 = vld [vmem:[#allocation3 + $0x40] sm:$0xff]
      %v1463 = vld [vmem:[#allocation3 + $0x48] sm:$0xff]
      %v1464 = vld [vmem:[#allocation3 + $0x50] sm:$0xff]
      %v1465 = vld [vmem:[#allocation3 + $0x58] sm:$0xff]
      %v1466 = vld [vmem:[#allocation3 + $0x60] sm:$0xff]
      %v1467 = vld [vmem:[#allocation3 + $0x68] sm:$0xff]
      %v1468 = vld [vmem:[#allocation3 + $0x70] sm:$0xff]
      %v1469 = vld [vmem:[#allocation3 + $0x78] sm:$0xff]
      %v1470 = vld [vmem:[#allocation4] sm:$0xff]
      %v1471 = vld [vmem:[#allocation4 + $0x8] sm:$0xff]
      %v1472 = vld [vmem:[#allocation4 + $0x10] sm:$0xff]
      %v1473 = vld [vmem:[#allocation4 + $0x18] sm:$0xff]
      %v1474 = vld [vmem:[#allocation4 + $0x20] sm:$0xff]
      %v1475 = vld [vmem:[#allocation4 + $0x28] sm:$0xff]
      %v1476 = vld [vmem:[#allocation4 + $0x30] sm:$0xff]
      %v1477 = vld [vmem:[#allocation4 + $0x38] sm:$0xff]
      %v1478 = vld [vmem:[#allocation4 + $0x40] sm:$0xff]
      %v1479 = vld [vmem:[#allocation4 + $0x48] sm:$0xff]
      %v1480 = vld [vmem:[#allocation4 + $0x50] sm:$0xff]
      %v1481 = vld [vmem:[#allocation4 + $0x58] sm:$0xff]
      %v1482 = vld [vmem:[#allocation4 + $0x60] sm:$0xff]
      %v1483 = vld [vmem:[#allocation4 + $0x68] sm:$0xff]
      %v1484 = vld [vmem:[#allocation4 + $0x70] sm:$0xff]
      %v1485 = vld [vmem:[#allocation4 + $0x78] sm:$0xff]
      %v1486 = vlog2.pop %v1470
      %v1487 = vmul.f32 %v1486, 0.6931472
      %v1488 = vlog2.pop %v1471
      %v1489 = vmul.f32 %v1488, 0.6931472
      %v1490 = vlog2.pop %v1472
      %v1491 = vmul.f32 %v1490, 0.6931472
      %v1492 = vlog2.pop %v1473
      %v1493 = vmul.f32 %v1492, 0.6931472
      %v1494 = vlog2.pop %v1474
      %v1495 = vmul.f32 %v1494, 0.6931472
      %v1496 = vlog2.pop %v1475
      %v1497 = vmul.f32 %v1496, 0.6931472
      %v1498 = vlog2.pop %v1476
      %v1499 = vmul.f32 %v1498, 0.6931472
      %v1500 = vlog2.pop %v1477
      %v1501 = vmul.f32 %v1500, 0.6931472
      %v1502 = vlog2.pop %v1478
      %v1503 = vmul.f32 %v1502, 0.6931472
      %v1504 = vlog2.pop %v1479
      %v1505 = vmul.f32 %v1504, 0.6931472
      %v1506 = vlog2.pop %v1480
      %v1507 = vmul.f32 %v1506, 0.6931472
      %v1508 = vlog2.pop %v1481
      %v1509 = vmul.f32 %v1508, 0.6931472
      %v1510 = vlog2.pop %v1482
      %v1511 = vmul.f32 %v1510, 0.6931472
      %v1512 = vlog2.pop %v1483
      %v1513 = vmul.f32 %v1512, 0.6931472
      %v1514 = vlog2.pop %v1484
      %v1515 = vmul.f32 %v1514, 0.6931472
      %v1516 = vlog2.pop %v1485
      %v1517 = vmul.f32 %v1516, 0.6931472
      %v1518 = vadd.f32 %v1454, %v1487
      %v1519 = vadd.f32 %v1455, %v1489
      %v1520 = vadd.f32 %v1456, %v1491
      %v1521 = vadd.f32 %v1457, %v1493
      %v1522 = vadd.f32 %v1458, %v1495
      %v1523 = vadd.f32 %v1459, %v1497
      %v1524 = vadd.f32 %v1460, %v1499
      %v1525 = vadd.f32 %v1461, %v1501
      %v1526 = vadd.f32 %v1462, %v1503
      %v1527 = vadd.f32 %v1463, %v1505
      %v1528 = vadd.f32 %v1464, %v1507
      %v1529 = vadd.f32 %v1465, %v1509
      %v1530 = vadd.f32 %v1466, %v1511
      %v1531 = vadd.f32 %v1467, %v1513
      %v1532 = vadd.f32 %v1468, %v1515
      %v1533 = vadd.f32 %v1469, %v1517
      %v1534 = vld [vmem:[#allocation7] sm:$0xff]
      %v1535 = vld [vmem:[#allocation7 + $0x8] sm:$0xff]
      %v1536 = vld [vmem:[#allocation7 + $0x10] sm:$0xff]
      %v1537 = vld [vmem:[#allocation7 + $0x18] sm:$0xff]
      %v1538 = vld [vmem:[#allocation7 + $0x20] sm:$0xff]
      %v1539 = vld [vmem:[#allocation7 + $0x28] sm:$0xff]
      %v1540 = vld [vmem:[#allocation7 + $0x30] sm:$0xff]
      %v1541 = vld [vmem:[#allocation7 + $0x38] sm:$0xff]
      %v1542 = vld [vmem:[#allocation7 + $0x40] sm:$0xff]
      %v1543 = vld [vmem:[#allocation7 + $0x48] sm:$0xff]
      %v1544 = vld [vmem:[#allocation7 + $0x50] sm:$0xff]
      %v1545 = vld [vmem:[#allocation7 + $0x58] sm:$0xff]
      %v1546 = vld [vmem:[#allocation7 + $0x60] sm:$0xff]
      %v1547 = vld [vmem:[#allocation7 + $0x68] sm:$0xff]
      %v1548 = vld [vmem:[#allocation7 + $0x70] sm:$0xff]
      %v1549 = vld [vmem:[#allocation7 + $0x78] sm:$0xff]
      %v1550 = vsub.f32 %v1518, %v1534
      %v1551 = vsub.f32 %v1519, %v1535
      %v1552 = vsub.f32 %v1520, %v1536
      %v1553 = vsub.f32 %v1521, %v1537
      %v1554 = vsub.f32 %v1522, %v1538
      %v1555 = vsub.f32 %v1523, %v1539
      %v1556 = vsub.f32 %v1524, %v1540
      %v1557 = vsub.f32 %v1525, %v1541
      %v1558 = vsub.f32 %v1526, %v1542
      %v1559 = vsub.f32 %v1527, %v1543
      %v1560 = vsub.f32 %v1528, %v1544
      %v1561 = vsub.f32 %v1529, %v1545
      %v1562 = vsub.f32 %v1530, %v1546
      %v1563 = vsub.f32 %v1531, %v1547
      %v1564 = vsub.f32 %v1532, %v1548
      %v1565 = vsub.f32 %v1533, %v1549
      %v1566 = vsel %vm1438, %v1550, 0.0
      %v1567 = vsel %vm1439, %v1551, 0.0
      %v1568 = vsel %vm1440, %v1552, 0.0
      %v1569 = vsel %vm1441, %v1553, 0.0
      %v1570 = vsel %vm1442, %v1554, 0.0
      %v1571 = vsel %vm1443, %v1555, 0.0
      %v1572 = vsel %vm1444, %v1556, 0.0
      %v1573 = vsel %vm1445, %v1557, 0.0
      %v1574 = vsel %vm1446, %v1558, 0.0
      %v1575 = vsel %vm1447, %v1559, 0.0
      %v1576 = vsel %vm1448, %v1560, 0.0
      %v1577 = vsel %vm1449, %v1561, 0.0
      %v1578 = vsel %vm1450, %v1562, 0.0
      %v1579 = vsel %vm1451, %v1563, 0.0
      %v1580 = vsel %vm1452, %v1564, 0.0
      %v1581 = vsel %vm1453, %v1565, 0.0
      %v1582 = vld [vmem:[#allocation6] sm:$0xff]
      %v1583 = vld [vmem:[#allocation6 + $0x8] sm:$0xff]
      %v1584 = vld [vmem:[#allocation6 + $0x10] sm:$0xff]
      %v1585 = vld [vmem:[#allocation6 + $0x18] sm:$0xff]
      %v1586 = vld [vmem:[#allocation6 + $0x20] sm:$0xff]
      %v1587 = vld [vmem:[#allocation6 + $0x28] sm:$0xff]
      %v1588 = vld [vmem:[#allocation6 + $0x30] sm:$0xff]
      %v1589 = vld [vmem:[#allocation6 + $0x38] sm:$0xff]
      %v1590 = vld [vmem:[#allocation6 + $0x40] sm:$0xff]
      %v1591 = vld [vmem:[#allocation6 + $0x48] sm:$0xff]
      %v1592 = vld [vmem:[#allocation6 + $0x50] sm:$0xff]
      %v1593 = vld [vmem:[#allocation6 + $0x58] sm:$0xff]
      %v1594 = vld [vmem:[#allocation6 + $0x60] sm:$0xff]
      %v1595 = vld [vmem:[#allocation6 + $0x68] sm:$0xff]
      %v1596 = vld [vmem:[#allocation6 + $0x70] sm:$0xff]
      %v1597 = vld [vmem:[#allocation6 + $0x78] sm:$0xff]
      %vm1598 = vcmp.eq.s32.totalorder %v1582, %v1422
      %vm1599 = vcmp.eq.s32.totalorder %v1583, %v1423
      %vm1600 = vcmp.eq.s32.totalorder %v1584, %v1424
      %vm1601 = vcmp.eq.s32.totalorder %v1585, %v1425
      %vm1602 = vcmp.eq.s32.totalorder %v1586, %v1426
      %vm1603 = vcmp.eq.s32.totalorder %v1587, %v1427
      %vm1604 = vcmp.eq.s32.totalorder %v1588, %v1428
      %vm1605 = vcmp.eq.s32.totalorder %v1589, %v1429
      %vm1606 = vcmp.eq.s32.totalorder %v1590, %v1430
      %vm1607 = vcmp.eq.s32.totalorder %v1591, %v1431
      %vm1608 = vcmp.eq.s32.totalorder %v1592, %v1432
      %vm1609 = vcmp.eq.s32.totalorder %v1593, %v1433
      %vm1610 = vcmp.eq.s32.totalorder %v1594, %v1434
      %vm1611 = vcmp.eq.s32.totalorder %v1595, %v1435
      %vm1612 = vcmp.eq.s32.totalorder %v1596, %v1436
      %vm1613 = vcmp.eq.s32.totalorder %v1597, %v1437
      %vm1614 = vmand %vm1438, %vm1598
      %vm1615 = vmand %vm1439, %vm1599
      %vm1616 = vmand %vm1440, %vm1600
      %vm1617 = vmand %vm1441, %vm1601
      %vm1618 = vmand %vm1442, %vm1602
      %vm1619 = vmand %vm1443, %vm1603
      %vm1620 = vmand %vm1444, %vm1604
      %vm1621 = vmand %vm1445, %vm1605
      %vm1622 = vmand %vm1446, %vm1606
      %vm1623 = vmand %vm1447, %vm1607
      %vm1624 = vmand %vm1448, %vm1608
      %vm1625 = vmand %vm1449, %vm1609
      %vm1626 = vmand %vm1450, %vm1610
      %vm1627 = vmand %vm1451, %vm1611
      %vm1628 = vmand %vm1452, %vm1612
      %vm1629 = vmand %vm1453, %vm1613
      %v1630 = vsel %vm1614, 1.0, 0.0
      %v1631 = vsel %vm1615, 1.0, 0.0
      %v1632 = vsel %vm1616, 1.0, 0.0
      %v1633 = vsel %vm1617, 1.0, 0.0
      %v1634 = vsel %vm1618, 1.0, 0.0
      %v1635 = vsel %vm1619, 1.0, 0.0
      %v1636 = vsel %vm1620, 1.0, 0.0
      %v1637 = vsel %vm1621, 1.0, 0.0
      %v1638 = vsel %vm1622, 1.0, 0.0
      %v1639 = vsel %vm1623, 1.0, 0.0
      %v1640 = vsel %vm1624, 1.0, 0.0
      %v1641 = vsel %vm1625, 1.0, 0.0
      %v1642 = vsel %vm1626, 1.0, 0.0
      %v1643 = vsel %vm1627, 1.0, 0.0
      %v1644 = vsel %vm1628, 1.0, 0.0
      %v1645 = vsel %vm1629, 1.0, 0.0
      %v1646 = vsel %vm1438, %v1534, 0.0
      %v1647 = vsel %vm1439, %v1535, 0.0
      %v1648 = vsel %vm1440, %v1536, 0.0
      %v1649 = vsel %vm1441, %v1537, 0.0
      %v1650 = vsel %vm1442, %v1538, 0.0
      %v1651 = vsel %vm1443, %v1539, 0.0
      %v1652 = vsel %vm1444, %v1540, 0.0
      %v1653 = vsel %vm1445, %v1541, 0.0
      %v1654 = vsel %vm1446, %v1542, 0.0
      %v1655 = vsel %vm1447, %v1543, 0.0
      %v1656 = vsel %vm1448, %v1544, 0.0
      %v1657 = vsel %vm1449, %v1545, 0.0
      %v1658 = vsel %vm1450, %v1546, 0.0
      %v1659 = vsel %vm1451, %v1547, 0.0
      %v1660 = vsel %vm1452, %v1548, 0.0
      %v1661 = vsel %vm1453, %v1549, 0.0
      %v1662 = vld [vmem:[#allocation5] sm:$0xff]
      %v1663 = vld [vmem:[#allocation5 + $0x8] sm:$0xff]
      %v1664 = vld [vmem:[#allocation5 + $0x10] sm:$0xff]
      %v1665 = vld [vmem:[#allocation5 + $0x18] sm:$0xff]
      %v1666 = vld [vmem:[#allocation5 + $0x20] sm:$0xff]
      %v1667 = vld [vmem:[#allocation5 + $0x28] sm:$0xff]
      %v1668 = vld [vmem:[#allocation5 + $0x30] sm:$0xff]
      %v1669 = vld [vmem:[#allocation5 + $0x38] sm:$0xff]
      %v1670 = vld [vmem:[#allocation5 + $0x40] sm:$0xff]
      %v1671 = vld [vmem:[#allocation5 + $0x48] sm:$0xff]
      %v1672 = vld [vmem:[#allocation5 + $0x50] sm:$0xff]
      %v1673 = vld [vmem:[#allocation5 + $0x58] sm:$0xff]
      %v1674 = vld [vmem:[#allocation5 + $0x60] sm:$0xff]
      %v1675 = vld [vmem:[#allocation5 + $0x68] sm:$0xff]
      %v1676 = vld [vmem:[#allocation5 + $0x70] sm:$0xff]
      %v1677 = vld [vmem:[#allocation5 + $0x78] sm:$0xff]
      %v1678 = vsel %vm1438, %v1662, 0.0
      %v1679 = vsel %vm1439, %v1663, 0.0
      %v1680 = vsel %vm1440, %v1664, 0.0
      %v1681 = vsel %vm1441, %v1665, 0.0
      %v1682 = vsel %vm1442, %v1666, 0.0
      %v1683 = vsel %vm1443, %v1667, 0.0
      %v1684 = vsel %vm1444, %v1668, 0.0
      %v1685 = vsel %vm1445, %v1669, 0.0
      %v1686 = vsel %vm1446, %v1670, 0.0
      %v1687 = vsel %vm1447, %v1671, 0.0
      %v1688 = vsel %vm1448, %v1672, 0.0
      %v1689 = vsel %vm1449, %v1673, 0.0
      %v1690 = vsel %vm1450, %v1674, 0.0
      %v1691 = vsel %vm1451, %v1675, 0.0
      %v1692 = vsel %vm1452, %v1676, 0.0
      %v1693 = vsel %vm1453, %v1677, 0.0
      %1710 = vrot.lane.b32.xlu0 %v1630, 1
      %v1711 = vpop.permute.xlu0 %1710
      %1712 = vrot.lane.b32.xlu0 %v1631, 1
      %v1713 = vpop.permute.xlu0 %1712
      %1714 = vrot.lane.b32.xlu0 %v1632, 1
      %v1715 = vpop.permute.xlu0 %1714
      %1716 = vrot.lane.b32.xlu0 %v1633, 1
      %v1717 = vpop.permute.xlu0 %1716
      %1718 = vrot.lane.b32.xlu0 %v1634, 1
      %v1719 = vpop.permute.xlu0 %1718
      %1720 = vrot.lane.b32.xlu0 %v1635, 1
      %v1721 = vpop.permute.xlu0 %1720
      %1722 = vrot.lane.b32.xlu0 %v1636, 1
      %v1723 = vpop.permute.xlu0 %1722
      %1724 = vrot.lane.b32.xlu0 %v1637, 1
      %v1725 = vpop.permute.xlu0 %1724
      %1726 = vrot.lane.b32.xlu0 %v1638, 1
      %v1727 = vpop.permute.xlu0 %1726
      %1728 = vrot.lane.b32.xlu0 %v1639, 1
      %v1729 = vpop.permute.xlu0 %1728
      %1730 = vrot.lane.b32.xlu0 %v1640, 1
      %v1731 = vpop.permute.xlu0 %1730
      %1732 = vrot.lane.b32.xlu0 %v1641, 1
      %v1733 = vpop.permute.xlu0 %1732
      %1734 = vrot.lane.b32.xlu0 %v1642, 1
      %v1735 = vpop.permute.xlu0 %1734
      %1736 = vrot.lane.b32.xlu0 %v1643, 1
      %v1737 = vpop.permute.xlu0 %1736
      %1738 = vrot.lane.b32.xlu0 %v1644, 1
      %v1739 = vpop.permute.xlu0 %1738
      %1740 = vrot.lane.b32.xlu0 %v1645, 1
      %v1741 = vpop.permute.xlu0 %1740
      %1774 = vrot.lane.b32.xlu0 %v1646, 2
      %v1775 = vpop.permute.xlu0 %1774
      %1776 = vrot.lane.b32.xlu0 %v1647, 2
      %v1777 = vpop.permute.xlu0 %1776
      %1778 = vrot.lane.b32.xlu0 %v1648, 2
      %v1779 = vpop.permute.xlu0 %1778
      %1780 = vrot.lane.b32.xlu0 %v1649, 2
      %v1781 = vpop.permute.xlu0 %1780
      %1782 = vrot.lane.b32.xlu0 %v1650, 2
      %v1783 = vpop.permute.xlu0 %1782
      %1784 = vrot.lane.b32.xlu0 %v1651, 2
      %v1785 = vpop.permute.xlu0 %1784
      %1786 = vrot.lane.b32.xlu0 %v1652, 2
      %v1787 = vpop.permute.xlu0 %1786
      %1788 = vrot.lane.b32.xlu0 %v1653, 2
      %v1789 = vpop.permute.xlu0 %1788
      %1790 = vrot.lane.b32.xlu0 %v1654, 2
      %v1791 = vpop.permute.xlu0 %1790
      %1792 = vrot.lane.b32.xlu0 %v1655, 2
      %v1793 = vpop.permute.xlu0 %1792
      %1794 = vrot.lane.b32.xlu0 %v1656, 2
      %v1795 = vpop.permute.xlu0 %1794
      %1796 = vrot.lane.b32.xlu0 %v1657, 2
      %v1797 = vpop.permute.xlu0 %1796
      %1798 = vrot.lane.b32.xlu0 %v1658, 2
      %v1799 = vpop.permute.xlu0 %1798
      %1800 = vrot.lane.b32.xlu0 %v1659, 2
      %v1801 = vpop.permute.xlu0 %1800
      %1802 = vrot.lane.b32.xlu0 %v1660, 2
      %v1803 = vpop.permute.xlu0 %1802
      %1804 = vrot.lane.b32.xlu0 %v1661, 2
      %v1805 = vpop.permute.xlu0 %1804
      %1838 = vrot.lane.b32.xlu0 %v1678, 3
      %v1839 = vpop.permute.xlu0 %1838
      %1840 = vrot.lane.b32.xlu0 %v1679, 3
      %v1841 = vpop.permute.xlu0 %1840
      %1842 = vrot.lane.b32.xlu0 %v1680, 3
      %v1843 = vpop.permute.xlu0 %1842
      %1844 = vrot.lane.b32.xlu0 %v1681, 3
      %v1845 = vpop.permute.xlu0 %1844
      %1846 = vrot.lane.b32.xlu0 %v1682, 3
      %v1847 = vpop.permute.xlu0 %1846
      %1848 = vrot.lane.b32.xlu0 %v1683, 3
      %v1849 = vpop.permute.xlu0 %1848
      %1850 = vrot.lane.b32.xlu0 %v1684, 3
      %v1851 = vpop.permute.xlu0 %1850
      %1852 = vrot.lane.b32.xlu0 %v1685, 3
      %v1853 = vpop.permute.xlu0 %1852
      %1854 = vrot.lane.b32.xlu0 %v1686, 3
      %v1855 = vpop.permute.xlu0 %1854
      %1856 = vrot.lane.b32.xlu0 %v1687, 3
      %v1857 = vpop.permute.xlu0 %1856
      %1858 = vrot.lane.b32.xlu0 %v1688, 3
      %v1859 = vpop.permute.xlu0 %1858
      %1860 = vrot.lane.b32.xlu0 %v1689, 3
      %v1861 = vpop.permute.xlu0 %1860
      %1862 = vrot.lane.b32.xlu0 %v1690, 3
      %v1863 = vpop.permute.xlu0 %1862
      %1864 = vrot.lane.b32.xlu0 %v1691, 3
      %v1865 = vpop.permute.xlu0 %1864
      %1866 = vrot.lane.b32.xlu0 %v1692, 3
      %v1867 = vpop.permute.xlu0 %1866
      %1868 = vrot.lane.b32.xlu0 %v1693, 3
      %v1869 = vpop.permute.xlu0 %1868
      %v1886 = vsel %vm883, %v1566, %v1711
      %v1887 = vsel %vm883, %v1567, %v1713
      %v1888 = vsel %vm883, %v1568, %v1715
      %v1889 = vsel %vm883, %v1569, %v1717
      %v1890 = vsel %vm883, %v1570, %v1719
      %v1891 = vsel %vm883, %v1571, %v1721
      %v1892 = vsel %vm883, %v1572, %v1723
      %v1893 = vsel %vm883, %v1573, %v1725
      %v1894 = vsel %vm883, %v1574, %v1727
      %v1895 = vsel %vm883, %v1575, %v1729
      %v1896 = vsel %vm883, %v1576, %v1731
      %v1897 = vsel %vm883, %v1577, %v1733
      %v1898 = vsel %vm883, %v1578, %v1735
      %v1899 = vsel %vm883, %v1579, %v1737
      %v1900 = vsel %vm883, %v1580, %v1739
      %v1901 = vsel %vm883, %v1581, %v1741
      %vm1902 = vcmask 15360
      %v1903 = vsel %vm1902, %v1886, %v1775
      %v1904 = vsel %vm1902, %v1887, %v1777
      %v1905 = vsel %vm1902, %v1888, %v1779
      %v1906 = vsel %vm1902, %v1889, %v1781
      %v1907 = vsel %vm1902, %v1890, %v1783
      %v1908 = vsel %vm1902, %v1891, %v1785
      %v1909 = vsel %vm1902, %v1892, %v1787
      %v1910 = vsel %vm1902, %v1893, %v1789
      %v1911 = vsel %vm1902, %v1894, %v1791
      %v1912 = vsel %vm1902, %v1895, %v1793
      %v1913 = vsel %vm1902, %v1896, %v1795
      %v1914 = vsel %vm1902, %v1897, %v1797
      %v1915 = vsel %vm1902, %v1898, %v1799
      %v1916 = vsel %vm1902, %v1899, %v1801
      %v1917 = vsel %vm1902, %v1900, %v1803
      %v1918 = vsel %vm1902, %v1901, %v1805
      %vm1919 = vcmask 23552
      %v1920 = vsel %vm1919, %v1903, %v1839
      %v1921 = vsel %vm1919, %v1904, %v1841
      %v1922 = vsel %vm1919, %v1905, %v1843
      %v1923 = vsel %vm1919, %v1906, %v1845
      %v1924 = vsel %vm1919, %v1907, %v1847
      %v1925 = vsel %vm1919, %v1908, %v1849
      %v1926 = vsel %vm1919, %v1909, %v1851
      %v1927 = vsel %vm1919, %v1910, %v1853
      %v1928 = vsel %vm1919, %v1911, %v1855
      %v1929 = vsel %vm1919, %v1912, %v1857
      %v1930 = vsel %vm1919, %v1913, %v1859
      %v1931 = vsel %vm1919, %v1914, %v1861
      %v1932 = vsel %vm1919, %v1915, %v1863
      %v1933 = vsel %vm1919, %v1916, %v1865
      %v1934 = vsel %vm1919, %v1917, %v1867
      %v1935 = vsel %vm1919, %v1918, %v1869
      %vm1936 = vcmask 31744
      %1937 = vst.msk [vmem:[%s2] sm:$0xff] %vm1936, %v1920
      %1938 = vst.msk [vmem:[%s2 + $0x8] sm:$0xff] %vm1936, %v1921
      %1939 = vst.msk [vmem:[%s2 + $0x10] sm:$0xff] %vm1936, %v1922
      %1940 = vst.msk [vmem:[%s2 + $0x18] sm:$0xff] %vm1936, %v1923
      %1941 = vst.msk [vmem:[%s2 + $0x20] sm:$0xff] %vm1936, %v1924
      %1942 = vst.msk [vmem:[%s2 + $0x28] sm:$0xff] %vm1936, %v1925
      %1943 = vst.msk [vmem:[%s2 + $0x30] sm:$0xff] %vm1936, %v1926
      %1944 = vst.msk [vmem:[%s2 + $0x38] sm:$0xff] %vm1936, %v1927
      %1945 = vst.msk [vmem:[%s2 + $0x40] sm:$0xff] %vm1936, %v1928
      %1946 = vst.msk [vmem:[%s2 + $0x48] sm:$0xff] %vm1936, %v1929
      %1947 = vst.msk [vmem:[%s2 + $0x50] sm:$0xff] %vm1936, %v1930
      %1948 = vst.msk [vmem:[%s2 + $0x58] sm:$0xff] %vm1936, %v1931
      %1949 = vst.msk [vmem:[%s2 + $0x60] sm:$0xff] %vm1936, %v1932
      %1950 = vst.msk [vmem:[%s2 + $0x68] sm:$0xff] %vm1936, %v1933
      %1951 = vst.msk [vmem:[%s2 + $0x70] sm:$0xff] %vm1936, %v1934
      %1952 = vst.msk [vmem:[%s2 + $0x78] sm:$0xff] %vm1936, %v1935
    $region29: #{tpu_custom_call.1} parent=1 // pred_fallthru
      _
    // Predicated region
    $region30: #{tpu_custom_call.1} parent=1 // pred_check
      _
    $region31: #{tpu_custom_call.1} parent=1 // pred_check_branch
      %1954 = sbr.rel (0) target = $region33
    $region32: #{tpu_custom_call.1} parent=1 // pred_region
      _
    $region33: #{tpu_custom_call.1} parent=1 // pred_fallthru
      _
    // Predicated region
    $region34: #{tpu_custom_call.1} parent=1 // pred_check
      _
    $region35: #{tpu_custom_call.1} parent=1 // pred_check_branch
      %1956 = sbr.rel (0) target = $region37
    $region36: #{tpu_custom_call.1} parent=1 // pred_region
      _
    $region37: #{tpu_custom_call.1} parent=1 // pred_fallthru
      _
    %1957 = vsyncpa [#allocation9], 1
    %1958 = vsyncpa [#allocation11], 1

</llo_original>
